<compile_context>
chip_gen: v7x
topology: tpu7x:2x2x1
jax: 0.10.0
libtpu: 0.0.40
codegen_flags: <defaults>
</compile_context>

<pallas_src>
import jax
import jax.numpy as jnp
from jax.experimental import pallas as pl
from jax.experimental.pallas import tpu as pltpu

EPS = 1e-5


def fused_kernel(x115_ref, x115s_ref, x109s_ref, w1t_ref, gamma_ref, beta_ref,
                 w2t_ref, o_ref):
    # ---- conv1 over all pixels (bf16 MXU, f32 accumulate) -> BN batch stats
    t_full = jnp.dot(x115_ref[...], w1t_ref[...],
                     preferred_element_type=jnp.float32)         # (P, C) f32

    p = x115_ref.shape[0]                                        # static P
    inv_p = jnp.float32(1.0 / p)
    # one pass over t_full: sum and sum-of-squares (biased variance, as in
    # PyTorch BatchNorm training-mode normalization)
    s1 = jnp.sum(t_full, axis=0, keepdims=True)                  # (1, C)
    s2 = jnp.sum(t_full * t_full, axis=0, keepdims=True)         # (1, C)
    mean = s1 * inv_p
    var = s2 * inv_p - mean * mean

    # fold BN into per-channel scale/shift:  bn(x) = a * x + b
    a = gamma_ref[...] * jax.lax.rsqrt(var + EPS)                # (1, C) f32
    b = beta_ref[...] - mean * a                                 # (1, C) f32

    # ---- conv1 restricted to the 49 stride-2-surviving pixels
    t49 = jnp.dot(x115s_ref[...], w1t_ref[...],
                  preferred_element_type=jnp.float32)            # (Ps, C) f32

    # BN + residual + ReLU on the surviving pixels only (all f32)
    y49 = jnp.maximum(x109s_ref[...] + t49 * a + b, 0.0)

    # ---- conv2 (1x1, stride 2 already applied by the pixel selection)
    o_ref[...] = jnp.dot(y49.astype(w2t_ref.dtype), w2t_ref[...],
                         preferred_element_type=jnp.float32)     # (Ps, C2)


def _vmem_spec():
    # whole-array blocks (everything fits comfortably in VMEM), single grid pt
    return pl.BlockSpec(memory_space=pltpu.MemorySpace.VMEM)


def model_forward(x115_nchw, x109_nchw, w1, gamma, beta, w2):
    N, C, H, W = x115_nchw.shape          # (1, 288, 14, 14)
    C2 = w2.shape[0]                      # 672
    Ho, Wo = (H + 1) // 2, (W + 1) // 2   # stride-2 output spatial dims

    # NCHW -> NHWC -> (P, C); bf16 for the MXU operands (glue)
    x115_full = jnp.transpose(x115_nchw, (0, 2, 3, 1)) \
                   .reshape(N * H * W, C).astype(jnp.bfloat16)
    # only the stride-2-surviving pixels of x115 / x109 go further
    x115_s = jnp.transpose(x115_nchw[:, :, ::2, ::2], (0, 2, 3, 1)) \
                .reshape(N * Ho * Wo, C).astype(jnp.bfloat16)
    x109_s = jnp.transpose(x109_nchw[:, :, ::2, ::2], (0, 2, 3, 1)) \
                .reshape(N * Ho * Wo, C).astype(jnp.float32)

    w1t = jnp.transpose(w1.reshape(C, C)).astype(jnp.bfloat16)    # (Cin, Cout)
    w2t = jnp.transpose(w2.reshape(C2, C)).astype(jnp.bfloat16)   # (Cin, C2)
    gamma2d = gamma.reshape(1, C).astype(jnp.float32)
    beta2d = beta.reshape(1, C).astype(jnp.float32)

    out = pl.pallas_call(
        fused_kernel,
        out_shape=jax.ShapeDtypeStruct((N * Ho * Wo, C2), jnp.float32),
        in_specs=[_vmem_spec()] * 7,
        out_specs=_vmem_spec(),
    )(x115_full, x115_s, x109_s, w1t, gamma2d, beta2d, w2t)

    # (Ps, C2) -> NHWC -> NCHW  (1, 672, 7, 7)
    return jnp.transpose(out.reshape(N, Ho, Wo, C2), (0, 3, 1, 2))


if __name__ == "__main__":
    key = jax.random.PRNGKey(0)
    k1, k2, k3, k4, k5, k6 = jax.random.split(key, 6)

    # shapes fixed by the module definition
    N, C, H, W = 1, 288, 14, 14
    C2 = 672

    x115 = jax.random.normal(k1, (N, C, H, W), dtype=jnp.float32)
    x109 = jax.random.normal(k2, (N, C, H, W), dtype=jnp.float32)

    # deterministic parameter initialization (no checkpoint loading)
    w1 = jax.random.normal(k3, (C, C, 1, 1), dtype=jnp.float32) * 0.05
    gamma = jax.random.normal(k4, (C,), dtype=jnp.float32) * 0.1 + 1.0
    beta = jax.random.normal(k5, (C,), dtype=jnp.float32) * 0.1
    w2 = jax.random.normal(k6, (C2, C, 1, 1), dtype=jnp.float32) * 0.05

    out = jax.jit(model_forward)(x115, x109, w1, gamma, beta, w2)
    jax.block_until_ready(out)
    assert out.shape == (N, C2, 7, 7) and out.dtype == jnp.float32
    print("KERNEL_OK")
</pallas_src>

<mosaic_0001>
module attributes {stable_mosaic.version = 11 : i64} {
  func.func @fused_kernel(%arg0: memref<196x288xbf16, #tpu.memory_space<vmem>>, %arg1: memref<49x288xbf16, #tpu.memory_space<vmem>>, %arg2: memref<49x288xf32, #tpu.memory_space<vmem>>, %arg3: memref<288x288xbf16, #tpu.memory_space<vmem>>, %arg4: memref<1x288xf32, #tpu.memory_space<vmem>>, %arg5: memref<1x288xf32, #tpu.memory_space<vmem>>, %arg6: memref<288x672xbf16, #tpu.memory_space<vmem>>, %arg7: memref<49x672xf32, #tpu.memory_space<vmem>>) attributes {dimension_semantics = [], scalar_prefetch = 0 : i64, scratch_operands = 0 : i64, tpu.core_type = #tpu.core_type<tc>} {
    %c0 = arith.constant 0 : index
    %c0_0 = arith.constant 0 : index
    %0 = vector.load %arg0[%c0, %c0_0] : memref<196x288xbf16, #tpu.memory_space<vmem>>, vector<196x288xbf16>
    %c0_1 = arith.constant 0 : index
    %c0_2 = arith.constant 0 : index
    %1 = vector.load %arg3[%c0_1, %c0_2] : memref<288x288xbf16, #tpu.memory_space<vmem>>, vector<288x288xbf16>
    %cst = arith.constant dense<0.000000e+00> : vector<196x288xf32>
    %2 = tpu.matmul %0, %1, %cst {dimension_numbers = #tpu.dot_dimension_numbers<[1], [0], [0], [1], [0, 0, 1, 1], [], []>} : vector<196x288xbf16>, vector<288x288xbf16>, vector<196x288xf32> -> vector<196x288xf32>
    %cst_3 = arith.constant dense<0.000000e+00> : vector<288xf32>
    %3 = vector.multi_reduction <add>, %2, %cst_3 [0] : vector<196x288xf32> to vector<288xf32>
    %4 = vector.shape_cast %3 : vector<288xf32> to vector<1x288xf32>
    %5 = arith.mulf %2, %2 : vector<196x288xf32>
    %cst_4 = arith.constant dense<0.000000e+00> : vector<288xf32>
    %6 = vector.multi_reduction <add>, %5, %cst_4 [0] : vector<196x288xf32> to vector<288xf32>
    %7 = vector.shape_cast %6 : vector<288xf32> to vector<1x288xf32>
    %cst_5 = arith.constant 0.00510204071 : f32
    %8 = vector.broadcast %cst_5 : f32 to vector<1x288xf32>
    %9 = arith.mulf %4, %8 : vector<1x288xf32>
    %cst_6 = arith.constant 0.00510204071 : f32
    %10 = vector.broadcast %cst_6 : f32 to vector<1x288xf32>
    %11 = arith.mulf %7, %10 : vector<1x288xf32>
    %12 = arith.mulf %9, %9 : vector<1x288xf32>
    %13 = arith.subf %11, %12 : vector<1x288xf32>
    %c0_7 = arith.constant 0 : index
    %c0_8 = arith.constant 0 : index
    %14 = vector.load %arg4[%c0_7, %c0_8] : memref<1x288xf32, #tpu.memory_space<vmem>>, vector<1x288xf32>
    %cst_9 = arith.constant 9.99999974E-6 : f32
    %15 = vector.broadcast %cst_9 : f32 to vector<1x288xf32>
    %16 = arith.addf %13, %15 : vector<1x288xf32>
    %17 = math.rsqrt %16 : vector<1x288xf32>
    %18 = arith.mulf %14, %17 : vector<1x288xf32>
    %c0_10 = arith.constant 0 : index
    %c0_11 = arith.constant 0 : index
    %19 = vector.load %arg5[%c0_10, %c0_11] : memref<1x288xf32, #tpu.memory_space<vmem>>, vector<1x288xf32>
    %20 = arith.mulf %9, %18 : vector<1x288xf32>
    %21 = arith.subf %19, %20 : vector<1x288xf32>
    %c0_12 = arith.constant 0 : index
    %c0_13 = arith.constant 0 : index
    %22 = vector.load %arg1[%c0_12, %c0_13] : memref<49x288xbf16, #tpu.memory_space<vmem>>, vector<49x288xbf16>
    %c0_14 = arith.constant 0 : index
    %c0_15 = arith.constant 0 : index
    %23 = vector.load %arg3[%c0_14, %c0_15] : memref<288x288xbf16, #tpu.memory_space<vmem>>, vector<288x288xbf16>
    %cst_16 = arith.constant dense<0.000000e+00> : vector<49x288xf32>
    %24 = tpu.matmul %22, %23, %cst_16 {dimension_numbers = #tpu.dot_dimension_numbers<[1], [0], [0], [1], [0, 0, 1, 1], [], []>} : vector<49x288xbf16>, vector<288x288xbf16>, vector<49x288xf32> -> vector<49x288xf32>
    %c0_17 = arith.constant 0 : index
    %c0_18 = arith.constant 0 : index
    %25 = vector.load %arg2[%c0_17, %c0_18] : memref<49x288xf32, #tpu.memory_space<vmem>>, vector<49x288xf32>
    %26 = vector.broadcast %18 : vector<1x288xf32> to vector<49x288xf32>
    %27 = arith.mulf %24, %26 : vector<49x288xf32>
    %28 = arith.addf %25, %27 : vector<49x288xf32>
    %29 = vector.broadcast %21 : vector<1x288xf32> to vector<49x288xf32>
    %30 = arith.addf %28, %29 : vector<49x288xf32>
    %cst_19 = arith.constant 0.000000e+00 : f32
    %31 = vector.broadcast %cst_19 : f32 to vector<49x288xf32>
    %32 = arith.maximumf %30, %31 : vector<49x288xf32>
    %33 = arith.truncf %32 : vector<49x288xf32> to vector<49x288xbf16>
    %c0_20 = arith.constant 0 : index
    %c0_21 = arith.constant 0 : index
    %34 = vector.load %arg6[%c0_20, %c0_21] : memref<288x672xbf16, #tpu.memory_space<vmem>>, vector<288x672xbf16>
    %cst_22 = arith.constant dense<0.000000e+00> : vector<49x672xf32>
    %35 = tpu.matmul %33, %34, %cst_22 {dimension_numbers = #tpu.dot_dimension_numbers<[1], [0], [0], [1], [0, 0, 1, 1], [], []>} : vector<49x288xbf16>, vector<288x672xbf16>, vector<49x672xf32> -> vector<49x672xf32>
    %c0_23 = arith.constant 0 : index
    %c0_24 = arith.constant 0 : index
    %36 = vector.load %arg7[%c0_23, %c0_24] : memref<49x672xf32, #tpu.memory_space<vmem>>, vector<49x672xf32>
    tpu.vector_store %arg7[%c0_23, %c0_24], %35 {strides = array<i32>} : memref<49x672xf32, #tpu.memory_space<vmem>>, vector<49x672xf32>,
    return
  }
}

</mosaic_0001>

<llo_original>
// kernel: model_forward.1
$region0: #{model_forward.1}
  #allocation0 [shape = 'u32[]', space=smem, size = 0x4, offset = 0x4, fixed_abs, tag = 'smem constant byte address 0x4 - core index']
  #allocation1 [shape = 'u32[144,128]{1,0:T(1,128)}', space=vmem, size = 0x12000, scoped, tag = 'internal scratch']
  %s0 = inlined_call_operand.vmem [shape: bf16[196,288], index: 0, kind: input, shape index: {}]
  %s1 = inlined_call_operand.vmem [shape: bf16[49,288], index: 1, kind: input, shape index: {}]
  %s2 = inlined_call_operand.vmem [shape: f32[49,288], index: 2, kind: input, shape index: {}]
  %s3 = inlined_call_operand.vmem [shape: bf16[288,288], index: 3, kind: input, shape index: {}]
  %s4 = inlined_call_operand.vmem [shape: f32[1,288], index: 4, kind: input, shape index: {}]
  %s5 = inlined_call_operand.vmem [shape: f32[1,288], index: 5, kind: input, shape index: {}]
  %s6 = inlined_call_operand.vmem [shape: bf16[288,672], index: 6, kind: input, shape index: {}]
  %s7 = inlined_call_operand.vmem [shape: f32[49,672], index: 7, kind: output, shape index: {}]
  %s8 = sld [smem:[#allocation0]]
  $region38: #{model_forward.1} parent=0
    _
  %s10 = ssub.s32 1, %s8
  %s11 = scalar_select 0, %s10, %s8
  // Predicated region
  $region2: #{model_forward.1} parent=0 // pred_check
    _
  $region3: #{model_forward.1} parent=0 // pred_check_branch
    %13 = sbr.rel (0) target = $region5
  $region4: #{model_forward.1} parent=0 // pred_region
    _
  $region5: #{model_forward.1} parent=0 // pred_fallthru
    _
  // Predicated region
  $region6: #{model_forward.1} parent=0 // pred_check
    _
  $region7: #{model_forward.1} parent=0 // pred_check_branch
    %15 = sbr.rel (0) target = $region9
  $region8: #{model_forward.1} parent=0 // pred_region
    _
  $region9: #{model_forward.1} parent=0 // pred_fallthru
    _
  // Predicated region
  $region10: #{model_forward.1} parent=0 // pred_check
    _
  $region11: #{model_forward.1} parent=0 // pred_check_branch
    %17 = sbr.rel (0) target = $region13
  $region12: #{model_forward.1} parent=0 // pred_region
    _
  $region13: #{model_forward.1} parent=0 // pred_fallthru
    _
  // Predicated region
  $region14: #{model_forward.1} parent=0 // pred_check
    _
  $region15: #{model_forward.1} parent=0 // pred_check_branch
    %19 = sbr.rel (0) target = $region17
  $region16: #{model_forward.1} parent=0 // pred_region
    _
  $region17: #{model_forward.1} parent=0 // pred_fallthru
    _
  // Predicated region
  $region18: #{model_forward.1} parent=0 // pred_check
    _
  $region19: #{model_forward.1} parent=0 // pred_check_branch
    %21 = sbr.rel (0) target = $region21
  $region20: #{model_forward.1} parent=0 // pred_region
    _
  $region21: #{model_forward.1} parent=0 // pred_fallthru
    _
  // Predicated region
  $region22: #{model_forward.1} parent=0 // pred_check
    _
  $region23: #{model_forward.1} parent=0 // pred_check_branch
    %23 = sbr.rel (0) target = $region25
  $region24: #{model_forward.1} parent=0 // pred_region
    _
  $region25: #{model_forward.1} parent=0 // pred_fallthru
    _
  // Predicated region
  $region26: #{model_forward.1} parent=0 // pred_check
    _
  $region27: #{model_forward.1} parent=0 // pred_check_branch
    %25 = sbr.rel (0) target = $region29
  $region28: #{model_forward.1} parent=0 // pred_region
    _
  $region29: #{model_forward.1} parent=0 // pred_fallthru
    _
  %v27 = vld [vmem:[%s0] sm:$0xff]
  %v28 = vld [vmem:[%s0 + $0x8] sm:$0xf]
  %v29 = vld [vmem:[%s0 + $0xc] sm:$0xff]
  %v30 = vld [vmem:[%s0 + $0x14] sm:$0xf]
  %v31 = vld [vmem:[%s0 + $0x18] sm:$0xff]
  %v32 = vld [vmem:[%s0 + $0x20] sm:$0xf]
  %v33 = vld [vmem:[%s0 + $0x24] sm:$0xff]
  %v34 = vld [vmem:[%s0 + $0x2c] sm:$0xf]
  %v35 = vld [vmem:[%s0 + $0x30] sm:$0xff]
  %v36 = vld [vmem:[%s0 + $0x38] sm:$0xf]
  %v37 = vld [vmem:[%s0 + $0x3c] sm:$0xff]
  %v38 = vld [vmem:[%s0 + $0x44] sm:$0xf]
  %v39 = vld [vmem:[%s0 + $0x48] sm:$0xff]
  %v40 = vld [vmem:[%s0 + $0x50] sm:$0xf]
  %v41 = vld [vmem:[%s0 + $0x54] sm:$0xff]
  %v42 = vld [vmem:[%s0 + $0x5c] sm:$0xf]
  %v43 = vld [vmem:[%s0 + $0x60] sm:$0xff]
  %v44 = vld [vmem:[%s0 + $0x68] sm:$0xf]
  %v45 = vld [vmem:[%s0 + $0x6c] sm:$0xff]
  %v46 = vld [vmem:[%s0 + $0x74] sm:$0xf]
  %v47 = vld [vmem:[%s0 + $0x78] sm:$0xff]
  %v48 = vld [vmem:[%s0 + $0x80] sm:$0xf]
  %v49 = vld [vmem:[%s0 + $0x84] sm:$0xff]
  %v50 = vld [vmem:[%s0 + $0x8c] sm:$0xf]
  %v51 = vld [vmem:[%s0 + $0x90] sm:$0xff]
  %v52 = vld [vmem:[%s0 + $0x98] sm:$0xf]
  %v53 = vld [vmem:[%s0 + $0x9c] sm:$0xff]
  %v54 = vld [vmem:[%s0 + $0xa4] sm:$0xf]
  %v55 = vld [vmem:[%s0 + $0xa8] sm:$0xff]
  %v56 = vld [vmem:[%s0 + $0xb0] sm:$0xf]
  %v57 = vld [vmem:[%s0 + $0xb4] sm:$0xff]
  %v58 = vld [vmem:[%s0 + $0xbc] sm:$0xf]
  %v59 = vld [vmem:[%s0 + $0xc0] sm:$0xff]
  %v60 = vld [vmem:[%s0 + $0xc8] sm:$0xf]
  %v61 = vld [vmem:[%s0 + $0xcc] sm:$0xff]
  %v62 = vld [vmem:[%s0 + $0xd4] sm:$0xf]
  %v63 = vld [vmem:[%s0 + $0xd8] sm:$0xff]
  %v64 = vld [vmem:[%s0 + $0xe0] sm:$0xf]
  %v65 = vld [vmem:[%s0 + $0xe4] sm:$0xff]
  %v66 = vld [vmem:[%s0 + $0xec] sm:$0xf]
  %v67 = vld [vmem:[%s0 + $0xf0] sm:$0xff]
  %v68 = vld [vmem:[%s0 + $0xf8] sm:$0xf]
  %v69 = vld [vmem:[%s0 + $0xfc] sm:$0xff]
  %v70 = vld [vmem:[%s0 + $0x104] sm:$0xf]
  %v71 = vld [vmem:[%s0 + $0x108] sm:$0xff]
  %v72 = vld [vmem:[%s0 + $0x110] sm:$0xf]
  %v73 = vld [vmem:[%s0 + $0x114] sm:$0xff]
  %v74 = vld [vmem:[%s0 + $0x11c] sm:$0xf]
  %v75 = vld [vmem:[%s0 + $0x120] sm:$0x33]
  %v76 = vld [vmem:[%s0 + $0x128] sm:$0x3]
  %v77 = vld [vmem:[%s3] sm:$0xff]
  %v78 = vld [vmem:[%s3 + $0x8] sm:$0xf]
  %v79 = vld [vmem:[%s3 + $0xc] sm:$0xff]
  %v80 = vld [vmem:[%s3 + $0x14] sm:$0xf]
  %v81 = vld [vmem:[%s3 + $0x18] sm:$0xff]
  %v82 = vld [vmem:[%s3 + $0x20] sm:$0xf]
  %v83 = vld [vmem:[%s3 + $0x24] sm:$0xff]
  %v84 = vld [vmem:[%s3 + $0x2c] sm:$0xf]
  %v85 = vld [vmem:[%s3 + $0x30] sm:$0xff]
  %v86 = vld [vmem:[%s3 + $0x38] sm:$0xf]
  %v87 = vld [vmem:[%s3 + $0x3c] sm:$0xff]
  %v88 = vld [vmem:[%s3 + $0x44] sm:$0xf]
  %v89 = vld [vmem:[%s3 + $0x48] sm:$0xff]
  %v90 = vld [vmem:[%s3 + $0x50] sm:$0xf]
  %v91 = vld [vmem:[%s3 + $0x54] sm:$0xff]
  %v92 = vld [vmem:[%s3 + $0x5c] sm:$0xf]
  %v93 = vld [vmem:[%s3 + $0x60] sm:$0xff]
  %v94 = vld [vmem:[%s3 + $0x68] sm:$0xf]
  %v95 = vld [vmem:[%s3 + $0x6c] sm:$0xff]
  %v96 = vld [vmem:[%s3 + $0x74] sm:$0xf]
  %v97 = vld [vmem:[%s3 + $0x78] sm:$0xff]
  %v98 = vld [vmem:[%s3 + $0x80] sm:$0xf]
  %v99 = vld [vmem:[%s3 + $0x84] sm:$0xff]
  %v100 = vld [vmem:[%s3 + $0x8c] sm:$0xf]
  %v101 = vld [vmem:[%s3 + $0x90] sm:$0xff]
  %v102 = vld [vmem:[%s3 + $0x98] sm:$0xf]
  %v103 = vld [vmem:[%s3 + $0x9c] sm:$0xff]
  %v104 = vld [vmem:[%s3 + $0xa4] sm:$0xf]
  %v105 = vld [vmem:[%s3 + $0xa8] sm:$0xff]
  %v106 = vld [vmem:[%s3 + $0xb0] sm:$0xf]
  %v107 = vld [vmem:[%s3 + $0xb4] sm:$0xff]
  %v108 = vld [vmem:[%s3 + $0xbc] sm:$0xf]
  %v109 = vld [vmem:[%s3 + $0xc0] sm:$0xff]
  %v110 = vld [vmem:[%s3 + $0xc8] sm:$0xf]
  %v111 = vld [vmem:[%s3 + $0xcc] sm:$0xff]
  %v112 = vld [vmem:[%s3 + $0xd4] sm:$0xf]
  %v113 = vld [vmem:[%s3 + $0xd8] sm:$0xff]
  %v114 = vld [vmem:[%s3 + $0xe0] sm:$0xf]
  %v115 = vld [vmem:[%s3 + $0xe4] sm:$0xff]
  %v116 = vld [vmem:[%s3 + $0xec] sm:$0xf]
  %v117 = vld [vmem:[%s3 + $0xf0] sm:$0xff]
  %v118 = vld [vmem:[%s3 + $0xf8] sm:$0xf]
  %v119 = vld [vmem:[%s3 + $0xfc] sm:$0xff]
  %v120 = vld [vmem:[%s3 + $0x104] sm:$0xf]
  %v121 = vld [vmem:[%s3 + $0x108] sm:$0xff]
  %v122 = vld [vmem:[%s3 + $0x110] sm:$0xf]
  %v123 = vld [vmem:[%s3 + $0x114] sm:$0xff]
  %v124 = vld [vmem:[%s3 + $0x11c] sm:$0xf]
  %v125 = vld [vmem:[%s3 + $0x120] sm:$0xff]
  %v126 = vld [vmem:[%s3 + $0x128] sm:$0xf]
  %v127 = vld [vmem:[%s3 + $0x12c] sm:$0xff]
  %v128 = vld [vmem:[%s3 + $0x134] sm:$0xf]
  %v129 = vld [vmem:[%s3 + $0x138] sm:$0xff]
  %v130 = vld [vmem:[%s3 + $0x140] sm:$0xf]
  %v131 = vld [vmem:[%s3 + $0x144] sm:$0xff]
  %v132 = vld [vmem:[%s3 + $0x14c] sm:$0xf]
  %v133 = vld [vmem:[%s3 + $0x150] sm:$0xff]
  %v134 = vld [vmem:[%s3 + $0x158] sm:$0xf]
  %v135 = vld [vmem:[%s3 + $0x15c] sm:$0xff]
  %v136 = vld [vmem:[%s3 + $0x164] sm:$0xf]
  %v137 = vld [vmem:[%s3 + $0x168] sm:$0xff]
  %v138 = vld [vmem:[%s3 + $0x170] sm:$0xf]
  %v139 = vld [vmem:[%s3 + $0x174] sm:$0xff]
  %v140 = vld [vmem:[%s3 + $0x17c] sm:$0xf]
  %v141 = vld [vmem:[%s3 + $0x180] sm:$0xff]
  %v142 = vld [vmem:[%s3 + $0x188] sm:$0xf]
  %v143 = vld [vmem:[%s3 + $0x18c] sm:$0xff]
  %v144 = vld [vmem:[%s3 + $0x194] sm:$0xf]
  %v145 = vld [vmem:[%s3 + $0x198] sm:$0xff]
  %v146 = vld [vmem:[%s3 + $0x1a0] sm:$0xf]
  %v147 = vld [vmem:[%s3 + $0x1a4] sm:$0xff]
  %v148 = vld [vmem:[%s3 + $0x1ac] sm:$0xf]
  %v199 = vunpack.c.l.b16 %v27
  %v200 = vunpack.c.h.b16 %v27
  %v201 = vunpack.c.l.b16 %v28
  %v202 = vunpack.c.l.b16 %v29
  %v203 = vunpack.c.h.b16 %v29
  %v204 = vunpack.c.l.b16 %v30
  %v205 = vunpack.c.l.b16 %v31
  %v206 = vunpack.c.h.b16 %v31
  %v207 = vunpack.c.l.b16 %v32
  %v208 = vunpack.c.l.b16 %v33
  %v209 = vunpack.c.h.b16 %v33
  %v210 = vunpack.c.l.b16 %v34
  %v211 = vunpack.c.l.b16 %v35
  %v212 = vunpack.c.h.b16 %v35
  %v213 = vunpack.c.l.b16 %v36
  %v214 = vunpack.c.l.b16 %v37
  %v215 = vunpack.c.h.b16 %v37
  %v216 = vunpack.c.l.b16 %v38
  %v217 = vunpack.c.l.b16 %v39
  %v218 = vunpack.c.h.b16 %v39
  %v219 = vunpack.c.l.b16 %v40
  %v220 = vunpack.c.l.b16 %v41
  %v221 = vunpack.c.h.b16 %v41
  %v222 = vunpack.c.l.b16 %v42
  %v223 = vunpack.c.l.b16 %v43
  %v224 = vunpack.c.h.b16 %v43
  %v225 = vunpack.c.l.b16 %v44
  %v226 = vunpack.c.l.b16 %v45
  %v227 = vunpack.c.h.b16 %v45
  %v228 = vunpack.c.l.b16 %v46
  %v229 = vunpack.c.l.b16 %v47
  %v230 = vunpack.c.h.b16 %v47
  %v231 = vunpack.c.l.b16 %v48
  %v232 = vunpack.c.l.b16 %v49
  %v233 = vunpack.c.h.b16 %v49
  %v234 = vunpack.c.l.b16 %v50
  %v235 = vunpack.c.l.b16 %v51
  %v236 = vunpack.c.h.b16 %v51
  %v237 = vunpack.c.l.b16 %v52
  %v238 = vunpack.c.l.b16 %v53
  %v239 = vunpack.c.h.b16 %v53
  %v240 = vunpack.c.l.b16 %v54
  %v241 = vunpack.c.l.b16 %v55
  %v242 = vunpack.c.h.b16 %v55
  %v243 = vunpack.c.l.b16 %v56
  %v244 = vunpack.c.l.b16 %v57
  %v245 = vunpack.c.h.b16 %v57
  %v246 = vunpack.c.l.b16 %v58
  %v247 = vunpack.c.l.b16 %v59
  %v248 = vunpack.c.h.b16 %v59
  %v249 = vunpack.c.l.b16 %v60
  %v250 = vunpack.c.l.b16 %v61
  %v251 = vunpack.c.h.b16 %v61
  %v252 = vunpack.c.l.b16 %v62
  %v253 = vunpack.c.l.b16 %v63
  %v254 = vunpack.c.h.b16 %v63
  %v255 = vunpack.c.l.b16 %v64
  %v256 = vunpack.c.l.b16 %v65
  %v257 = vunpack.c.h.b16 %v65
  %v258 = vunpack.c.l.b16 %v66
  %v259 = vunpack.c.l.b16 %v67
  %v260 = vunpack.c.h.b16 %v67
  %v261 = vunpack.c.l.b16 %v68
  %v262 = vunpack.c.l.b16 %v69
  %v263 = vunpack.c.h.b16 %v69
  %v264 = vunpack.c.l.b16 %v70
  %v265 = vunpack.c.l.b16 %v71
  %v266 = vunpack.c.h.b16 %v71
  %v267 = vunpack.c.l.b16 %v72
  %v268 = vunpack.c.l.b16 %v73
  %v269 = vunpack.c.h.b16 %v73
  %v270 = vunpack.c.l.b16 %v74
  %v271 = vunpack.c.l.b16 %v75
  %v272 = vunpack.c.h.b16 %v75
  %v273 = vunpack.c.l.b16 %v76
  %v274 = vpack.c.b16 %v202, %v199
  %v275 = vpack.c.b16 %v203, %v200
  %v276 = vpack.c.b16 %v204, %v201
  %v277 = vpack.c.b16 %v208, %v205
  %v278 = vpack.c.b16 %v209, %v206
  %v279 = vpack.c.b16 %v210, %v207
  %v280 = vpack.c.b16 %v214, %v211
  %v281 = vpack.c.b16 %v215, %v212
  %v282 = vpack.c.b16 %v216, %v213
  %v283 = vpack.c.b16 %v220, %v217
  %v284 = vpack.c.b16 %v221, %v218
  %v285 = vpack.c.b16 %v222, %v219
  %v286 = vpack.c.b16 %v226, %v223
  %v287 = vpack.c.b16 %v227, %v224
  %v288 = vpack.c.b16 %v228, %v225
  %v289 = vpack.c.b16 %v232, %v229
  %v290 = vpack.c.b16 %v233, %v230
  %v291 = vpack.c.b16 %v234, %v231
  %v292 = vpack.c.b16 %v238, %v235
  %v293 = vpack.c.b16 %v239, %v236
  %v294 = vpack.c.b16 %v240, %v237
  %v295 = vpack.c.b16 %v244, %v241
  %v296 = vpack.c.b16 %v245, %v242
  %v297 = vpack.c.b16 %v246, %v243
  %v298 = vpack.c.b16 %v250, %v247
  %v299 = vpack.c.b16 %v251, %v248
  %v300 = vpack.c.b16 %v252, %v249
  %v301 = vpack.c.b16 %v256, %v253
  %v302 = vpack.c.b16 %v257, %v254
  %v303 = vpack.c.b16 %v258, %v255
  %v304 = vpack.c.b16 %v262, %v259
  %v305 = vpack.c.b16 %v263, %v260
  %v306 = vpack.c.b16 %v264, %v261
  %v307 = vpack.c.b16 %v268, %v265
  %v308 = vpack.c.b16 %v269, %v266
  %v309 = vpack.c.b16 %v270, %v267
  %v310 = vpack.c.b16 %v271, %v271
  %v311 = vpack.c.b16 %v272, %v272
  %v312 = vpack.c.b16 %v273, %v273
  %v411 = vunpack.c.l.b16 %v77
  %v412 = vunpack.c.h.b16 %v77
  %v413 = vunpack.c.l.b16 %v78
  %v414 = vunpack.c.l.b16 %v79
  %v415 = vunpack.c.h.b16 %v79
  %v416 = vunpack.c.l.b16 %v80
  %v417 = vunpack.c.l.b16 %v81
  %v418 = vunpack.c.h.b16 %v81
  %v419 = vunpack.c.l.b16 %v82
  %v420 = vunpack.c.l.b16 %v83
  %v421 = vunpack.c.h.b16 %v83
  %v422 = vunpack.c.l.b16 %v84
  %v423 = vunpack.c.l.b16 %v85
  %v424 = vunpack.c.h.b16 %v85
  %v425 = vunpack.c.l.b16 %v86
  %v426 = vunpack.c.l.b16 %v87
  %v427 = vunpack.c.h.b16 %v87
  %v428 = vunpack.c.l.b16 %v88
  %v429 = vunpack.c.l.b16 %v89
  %v430 = vunpack.c.h.b16 %v89
  %v431 = vunpack.c.l.b16 %v90
  %v432 = vunpack.c.l.b16 %v91
  %v433 = vunpack.c.h.b16 %v91
  %v434 = vunpack.c.l.b16 %v92
  %v435 = vunpack.c.l.b16 %v93
  %v436 = vunpack.c.h.b16 %v93
  %v437 = vunpack.c.l.b16 %v94
  %v438 = vunpack.c.l.b16 %v95
  %v439 = vunpack.c.h.b16 %v95
  %v440 = vunpack.c.l.b16 %v96
  %v441 = vunpack.c.l.b16 %v97
  %v442 = vunpack.c.h.b16 %v97
  %v443 = vunpack.c.l.b16 %v98
  %v444 = vunpack.c.l.b16 %v99
  %v445 = vunpack.c.h.b16 %v99
  %v446 = vunpack.c.l.b16 %v100
  %v447 = vunpack.c.l.b16 %v101
  %v448 = vunpack.c.h.b16 %v101
  %v449 = vunpack.c.l.b16 %v102
  %v450 = vunpack.c.l.b16 %v103
  %v451 = vunpack.c.h.b16 %v103
  %v452 = vunpack.c.l.b16 %v104
  %v453 = vunpack.c.l.b16 %v105
  %v454 = vunpack.c.h.b16 %v105
  %v455 = vunpack.c.l.b16 %v106
  %v456 = vunpack.c.l.b16 %v107
  %v457 = vunpack.c.h.b16 %v107
  %v458 = vunpack.c.l.b16 %v108
  %v459 = vunpack.c.l.b16 %v109
  %v460 = vunpack.c.h.b16 %v109
  %v461 = vunpack.c.l.b16 %v110
  %v462 = vunpack.c.l.b16 %v111
  %v463 = vunpack.c.h.b16 %v111
  %v464 = vunpack.c.l.b16 %v112
  %v465 = vunpack.c.l.b16 %v113
  %v466 = vunpack.c.h.b16 %v113
  %v467 = vunpack.c.l.b16 %v114
  %v468 = vunpack.c.l.b16 %v115
  %v469 = vunpack.c.h.b16 %v115
  %v470 = vunpack.c.l.b16 %v116
  %v471 = vunpack.c.l.b16 %v117
  %v472 = vunpack.c.h.b16 %v117
  %v473 = vunpack.c.l.b16 %v118
  %v474 = vunpack.c.l.b16 %v119
  %v475 = vunpack.c.h.b16 %v119
  %v476 = vunpack.c.l.b16 %v120
  %v477 = vunpack.c.l.b16 %v121
  %v478 = vunpack.c.h.b16 %v121
  %v479 = vunpack.c.l.b16 %v122
  %v480 = vunpack.c.l.b16 %v123
  %v481 = vunpack.c.h.b16 %v123
  %v482 = vunpack.c.l.b16 %v124
  %v483 = vunpack.c.l.b16 %v125
  %v484 = vunpack.c.h.b16 %v125
  %v485 = vunpack.c.l.b16 %v126
  %v486 = vunpack.c.l.b16 %v127
  %v487 = vunpack.c.h.b16 %v127
  %v488 = vunpack.c.l.b16 %v128
  %v489 = vunpack.c.l.b16 %v129
  %v490 = vunpack.c.h.b16 %v129
  %v491 = vunpack.c.l.b16 %v130
  %v492 = vunpack.c.l.b16 %v131
  %v493 = vunpack.c.h.b16 %v131
  %v494 = vunpack.c.l.b16 %v132
  %v495 = vunpack.c.l.b16 %v133
  %v496 = vunpack.c.h.b16 %v133
  %v497 = vunpack.c.l.b16 %v134
  %v498 = vunpack.c.l.b16 %v135
  %v499 = vunpack.c.h.b16 %v135
  %v500 = vunpack.c.l.b16 %v136
  %v501 = vunpack.c.l.b16 %v137
  %v502 = vunpack.c.h.b16 %v137
  %v503 = vunpack.c.l.b16 %v138
  %v504 = vunpack.c.l.b16 %v139
  %v505 = vunpack.c.h.b16 %v139
  %v506 = vunpack.c.l.b16 %v140
  %v507 = vunpack.c.l.b16 %v141
  %v508 = vunpack.c.h.b16 %v141
  %v509 = vunpack.c.l.b16 %v142
  %v510 = vunpack.c.l.b16 %v143
  %v511 = vunpack.c.h.b16 %v143
  %v512 = vunpack.c.l.b16 %v144
  %v513 = vunpack.c.l.b16 %v145
  %v514 = vunpack.c.h.b16 %v145
  %v515 = vunpack.c.l.b16 %v146
  %v516 = vunpack.c.l.b16 %v147
  %v517 = vunpack.c.h.b16 %v147
  %v518 = vunpack.c.l.b16 %v148
  %v519 = vpack.c.b16 %v414, %v411
  %v520 = vpack.c.b16 %v415, %v412
  %v521 = vpack.c.b16 %v416, %v413
  %v522 = vpack.c.b16 %v420, %v417
  %v523 = vpack.c.b16 %v421, %v418
  %v524 = vpack.c.b16 %v422, %v419
  %v525 = vpack.c.b16 %v426, %v423
  %v526 = vpack.c.b16 %v427, %v424
  %v527 = vpack.c.b16 %v428, %v425
  %v528 = vpack.c.b16 %v432, %v429
  %v529 = vpack.c.b16 %v433, %v430
  %v530 = vpack.c.b16 %v434, %v431
  %v531 = vpack.c.b16 %v438, %v435
  %v532 = vpack.c.b16 %v439, %v436
  %v533 = vpack.c.b16 %v440, %v437
  %v534 = vpack.c.b16 %v444, %v441
  %v535 = vpack.c.b16 %v445, %v442
  %v536 = vpack.c.b16 %v446, %v443
  %v537 = vpack.c.b16 %v450, %v447
  %v538 = vpack.c.b16 %v451, %v448
  %v539 = vpack.c.b16 %v452, %v449
  %v540 = vpack.c.b16 %v456, %v453
  %v541 = vpack.c.b16 %v457, %v454
  %v542 = vpack.c.b16 %v458, %v455
  %v543 = vpack.c.b16 %v462, %v459
  %v544 = vpack.c.b16 %v463, %v460
  %v545 = vpack.c.b16 %v464, %v461
  %v546 = vpack.c.b16 %v468, %v465
  %v547 = vpack.c.b16 %v469, %v466
  %v548 = vpack.c.b16 %v470, %v467
  %v549 = vpack.c.b16 %v474, %v471
  %v550 = vpack.c.b16 %v475, %v472
  %v551 = vpack.c.b16 %v476, %v473
  %v552 = vpack.c.b16 %v480, %v477
  %v553 = vpack.c.b16 %v481, %v478
  %v554 = vpack.c.b16 %v482, %v479
  %v555 = vpack.c.b16 %v486, %v483
  %v556 = vpack.c.b16 %v487, %v484
  %v557 = vpack.c.b16 %v488, %v485
  %v558 = vpack.c.b16 %v492, %v489
  %v559 = vpack.c.b16 %v493, %v490
  %v560 = vpack.c.b16 %v494, %v491
  %v561 = vpack.c.b16 %v498, %v495
  %v562 = vpack.c.b16 %v499, %v496
  %v563 = vpack.c.b16 %v500, %v497
  %v564 = vpack.c.b16 %v504, %v501
  %v565 = vpack.c.b16 %v505, %v502
  %v566 = vpack.c.b16 %v506, %v503
  %v567 = vpack.c.b16 %v510, %v507
  %v568 = vpack.c.b16 %v511, %v508
  %v569 = vpack.c.b16 %v512, %v509
  %v570 = vpack.c.b16 %v516, %v513
  %v571 = vpack.c.b16 %v517, %v514
  %v572 = vpack.c.b16 %v518, %v515
  %vm627 = vcmask 261120
  %v629 = vsel %vm627, %v276, 0
  %v632 = vsel %vm627, %v279, 0
  %v635 = vsel %vm627, %v282, 0
  %v638 = vsel %vm627, %v285, 0
  %v641 = vsel %vm627, %v288, 0
  %v644 = vsel %vm627, %v291, 0
  %v647 = vsel %vm627, %v294, 0
  %v650 = vsel %vm627, %v297, 0
  %v653 = vsel %vm627, %v300, 0
  %v656 = vsel %vm627, %v303, 0
  %v659 = vsel %vm627, %v306, 0
  %v662 = vsel %vm627, %v309, 0
  %v665 = vsel %vm627, %v312, 0
  %667 = vmatprep.subr.bf16.mxu0 %v520
  %668 = vmatpush1.bf16.msra.mxu0 %v519
  %669 = vmatprep.subr.bf16.mxu0 %v523
  %670 = vmatpush1.bf16.msra.mxu0 %v522
  %671 = vmatprep.subr.bf16.mxu0 %v526
  %672 = vmatpush1.bf16.msra.mxu0 %v525
  %673 = vmatprep.subr.bf16.mxu0 %v529
  %674 = vmatpush1.bf16.msra.mxu0 %v528
  %675 = vmatprep.subr.bf16.mxu0 %v532
  %676 = vmatpush1.bf16.msra.mxu0 %v531
  %677 = vmatprep.subr.bf16.mxu0 %v535
  %678 = vmatpush1.bf16.msra.mxu0 %v534
  %679 = vmatprep.subr.bf16.mxu0 %v538
  %680 = vmatpush1.bf16.msra.mxu0 %v537
  %681 = vmatprep.subr.bf16.mxu0 %v541
  %682 = vmatpush1.bf16.msra.mxu0 %v540
  %683 = vmatprep.subr.bf16.mxu0 %v544
  %684 = vmatpush1.bf16.msra.mxu0 %v543
  %685 = vmatprep.subr.bf16.mxu0 %v547
  %686 = vmatpush1.bf16.msra.mxu0 %v546
  %687 = vmatprep.subr.bf16.mxu0 %v550
  %688 = vmatpush1.bf16.msra.mxu0 %v549
  %689 = vmatprep.subr.bf16.mxu0 %v553
  %690 = vmatpush1.bf16.msra.mxu0 %v552
  %691 = vmatprep.subr.bf16.mxu0 %v556
  %692 = vmatpush1.bf16.msra.mxu0 %v555
  %693 = vmatprep.subr.bf16.mxu0 %v559
  %694 = vmatpush1.bf16.msra.mxu0 %v558
  %695 = vmatprep.subr.bf16.mxu0 %v562
  %696 = vmatpush1.bf16.msra.mxu0 %v561
  %697 = vmatprep.subr.bf16.mxu0 %v565
  %698 = vmatpush1.bf16.msra.mxu0 %v564
  %699 = vmatprep.mubr.bf16.mxu0 %v275
  %700 = vmatmul.mubr.bf16.gmra.mrb[0].mxu0 %v274
  %v701 = vpop.f32.mrb[0].mxu0
  %v702 = vadd.f32 0.0, %v701
  %v703 = vpop.f32.mrb[0].mxu0
  %v704 = vadd.f32 0.0, %v703
  %v705 = vpop.f32.mrb[0].mxu0
  %v706 = vadd.f32 0.0, %v705
  %v707 = vpop.f32.mrb[0].mxu0
  %v708 = vadd.f32 0.0, %v707
  %709 = vmatprep.mubr.bf16.mxu0 %v278
  %710 = vmatmul.mubr.bf16.gmra.mrb[0].mxu0 %v277
  %v711 = vpop.f32.mrb[0].mxu0
  %v712 = vadd.f32 0.0, %v711
  %v713 = vpop.f32.mrb[0].mxu0
  %v714 = vadd.f32 0.0, %v713
  %v715 = vpop.f32.mrb[0].mxu0
  %v716 = vadd.f32 0.0, %v715
  %v717 = vpop.f32.mrb[0].mxu0
  %v718 = vadd.f32 0.0, %v717
  %719 = vmatprep.mubr.bf16.mxu0 %v281
  %720 = vmatmul.mubr.bf16.gmra.mrb[0].mxu0 %v280
  %v721 = vpop.f32.mrb[0].mxu0
  %v722 = vadd.f32 0.0, %v721
  %v723 = vpop.f32.mrb[0].mxu0
  %v724 = vadd.f32 0.0, %v723
  %v725 = vpop.f32.mrb[0].mxu0
  %v726 = vadd.f32 0.0, %v725
  %v727 = vpop.f32.mrb[0].mxu0
  %v728 = vadd.f32 0.0, %v727
  %729 = vmatprep.mubr.bf16.mxu0 %v284
  %730 = vmatmul.mubr.bf16.gmra.mrb[0].mxu0 %v283
  %v731 = vpop.f32.mrb[0].mxu0
  %v732 = vadd.f32 0.0, %v731
  %v733 = vpop.f32.mrb[0].mxu0
  %v734 = vadd.f32 0.0, %v733
  %v735 = vpop.f32.mrb[0].mxu0
  %v736 = vadd.f32 0.0, %v735
  %v737 = vpop.f32.mrb[0].mxu0
  %v738 = vadd.f32 0.0, %v737
  %739 = vmatprep.mubr.bf16.mxu0 %v287
  %740 = vmatmul.mubr.bf16.gmra.mrb[0].mxu0 %v286
  %v741 = vpop.f32.mrb[0].mxu0
  %v742 = vadd.f32 0.0, %v741
  %v743 = vpop.f32.mrb[0].mxu0
  %v744 = vadd.f32 0.0, %v743
  %v745 = vpop.f32.mrb[0].mxu0
  %v746 = vadd.f32 0.0, %v745
  %v747 = vpop.f32.mrb[0].mxu0
  %v748 = vadd.f32 0.0, %v747
  %749 = vmatprep.mubr.bf16.mxu0 %v290
  %750 = vmatmul.mubr.bf16.gmra.mrb[0].mxu0 %v289
  %v751 = vpop.f32.mrb[0].mxu0
  %v752 = vadd.f32 0.0, %v751
  %v753 = vpop.f32.mrb[0].mxu0
  %v754 = vadd.f32 0.0, %v753
  %v755 = vpop.f32.mrb[0].mxu0
  %v756 = vadd.f32 0.0, %v755
  %v757 = vpop.f32.mrb[0].mxu0
  %v758 = vadd.f32 0.0, %v757
  %759 = vmatprep.mubr.bf16.mxu0 %v293
  %760 = vmatmul.mubr.bf16.gmra.mrb[0].mxu0 %v292
  %v761 = vpop.f32.mrb[0].mxu0
  %v762 = vadd.f32 0.0, %v761
  %v763 = vpop.f32.mrb[0].mxu0
  %v764 = vadd.f32 0.0, %v763
  %v765 = vpop.f32.mrb[0].mxu0
  %v766 = vadd.f32 0.0, %v765
  %v767 = vpop.f32.mrb[0].mxu0
  %v768 = vadd.f32 0.0, %v767
  %769 = vmatprep.mubr.bf16.mxu0 %v296
  %770 = vmatmul.mubr.bf16.gmra.mrb[0].mxu0 %v295
  %v771 = vpop.f32.mrb[0].mxu0
  %v772 = vadd.f32 0.0, %v771
  %v773 = vpop.f32.mrb[0].mxu0
  %v774 = vadd.f32 0.0, %v773
  %v775 = vpop.f32.mrb[0].mxu0
  %v776 = vadd.f32 0.0, %v775
  %v777 = vpop.f32.mrb[0].mxu0
  %v778 = vadd.f32 0.0, %v777
  %779 = vmatprep.mubr.bf16.mxu0 %v299
  %780 = vmatmul.mubr.bf16.gmra.mrb[0].mxu0 %v298
  %v781 = vpop.f32.mrb[0].mxu0
  %v782 = vadd.f32 0.0, %v781
  %v783 = vpop.f32.mrb[0].mxu0
  %v784 = vadd.f32 0.0, %v783
  %v785 = vpop.f32.mrb[0].mxu0
  %v786 = vadd.f32 0.0, %v785
  %v787 = vpop.f32.mrb[0].mxu0
  %v788 = vadd.f32 0.0, %v787
  %789 = vmatprep.mubr.bf16.mxu0 %v302
  %790 = vmatmul.mubr.bf16.gmra.mrb[0].mxu0 %v301
  %v791 = vpop.f32.mrb[0].mxu0
  %v792 = vadd.f32 0.0, %v791
  %v793 = vpop.f32.mrb[0].mxu0
  %v794 = vadd.f32 0.0, %v793
  %v795 = vpop.f32.mrb[0].mxu0
  %v796 = vadd.f32 0.0, %v795
  %v797 = vpop.f32.mrb[0].mxu0
  %v798 = vadd.f32 0.0, %v797
  %799 = vmatprep.mubr.bf16.mxu0 %v305
  %800 = vmatmul.mubr.bf16.gmra.mrb[0].mxu0 %v304
  %v801 = vpop.f32.mrb[0].mxu0
  %v802 = vadd.f32 0.0, %v801
  %v803 = vpop.f32.mrb[0].mxu0
  %v804 = vadd.f32 0.0, %v803
  %v805 = vpop.f32.mrb[0].mxu0
  %v806 = vadd.f32 0.0, %v805
  %v807 = vpop.f32.mrb[0].mxu0
  %v808 = vadd.f32 0.0, %v807
  %809 = vmatprep.mubr.bf16.mxu0 %v308
  %810 = vmatmul.mubr.bf16.gmra.mrb[0].mxu0 %v307
  %v811 = vpop.f32.mrb[0].mxu0
  %v812 = vadd.f32 0.0, %v811
  %v813 = vpop.f32.mrb[0].mxu0
  %v814 = vadd.f32 0.0, %v813
  %v815 = vpop.f32.mrb[0].mxu0
  %v816 = vadd.f32 0.0, %v815
  %v817 = vpop.f32.mrb[0].mxu0
  %v818 = vadd.f32 0.0, %v817
  %819 = vmatprep.mubr.bf16.mxu0 %v311
  %820 = vmatmul.mubr.bf16.gmra.mrb[0].mxu0 %v310
  %v821 = vpop.f32.mrb[0].mxu0
  %v822 = vadd.f32 0.0, %v821
  %v823 = vpop.f32.mrb[0].mxu0
  %v824 = vadd.f32 0.0, %v823
  %v825 = vpop.f32.mrb[0].mxu0
  %v826 = vpop.f32.mrb[0].mxu0
  %827 = vdwg.mxu0
  %828 = vmatprep.subr.bf16.mxu0 %v568
  %829 = vmatpush1.bf16.msra.mxu0 %v567
  %830 = vmatprep.subr.bf16.mxu0 %v571
  %831 = vmatpush1.bf16.msra.mxu0 %v570
  %832 = vmatprep.subr.bf16.mxu0 0
  %833 = vmatpush1.bf16.msra.mxu0 0
  %834 = vmatprep.subr.bf16.mxu0 0
  %835 = vmatpush1.bf16.msra.mxu0 0
  %836 = vmatprep.subr.bf16.mxu0 0
  %837 = vmatpush1.bf16.msra.mxu0 0
  %838 = vmatprep.subr.bf16.mxu0 0
  %839 = vmatpush1.bf16.msra.mxu0 0
  %840 = vmatprep.subr.bf16.mxu0 0
  %841 = vmatpush1.bf16.msra.mxu0 0
  %842 = vmatprep.subr.bf16.mxu0 0
  %843 = vmatpush1.bf16.msra.mxu0 0
  %844 = vmatprep.subr.bf16.mxu0 0
  %845 = vmatpush1.bf16.msra.mxu0 0
  %846 = vmatprep.subr.bf16.mxu0 0
  %847 = vmatpush1.bf16.msra.mxu0 0
  %848 = vmatprep.subr.bf16.mxu0 0
  %849 = vmatpush1.bf16.msra.mxu0 0
  %850 = vmatprep.subr.bf16.mxu0 0
  %851 = vmatpush1.bf16.msra.mxu0 0
  %852 = vmatprep.subr.bf16.mxu0 0
  %853 = vmatpush1.bf16.msra.mxu0 0
  %854 = vmatprep.subr.bf16.mxu0 0
  %855 = vmatpush1.bf16.msra.mxu0 0
  %856 = vmatprep.subr.bf16.mxu0 0
  %857 = vmatpush1.bf16.msra.mxu0 0
  %858 = vmatprep.subr.bf16.mxu0 0
  %859 = vmatpush1.bf16.msra.mxu0 0
  %860 = vmatprep.mubr.bf16.mxu0 0
  %861 = vmatmul.mubr.bf16.gmra.mrb[0].mxu0 %v629
  %v862 = vpop.f32.mrb[0].mxu0
  %v863 = vadd.f32 %v702, %v862
  %v864 = vpop.f32.mrb[0].mxu0
  %v865 = vadd.f32 %v704, %v864
  %v866 = vpop.f32.mrb[0].mxu0
  %v867 = vadd.f32 %v706, %v866
  %v868 = vpop.f32.mrb[0].mxu0
  %v869 = vadd.f32 %v708, %v868
  %870 = vmatprep.mubr.bf16.mxu0 0
  %871 = vmatmul.mubr.bf16.gmra.mrb[0].mxu0 %v632
  %v872 = vpop.f32.mrb[0].mxu0
  %v873 = vadd.f32 %v712, %v872
  %v874 = vpop.f32.mrb[0].mxu0
  %v875 = vadd.f32 %v714, %v874
  %v876 = vpop.f32.mrb[0].mxu0
  %v877 = vadd.f32 %v716, %v876
  %v878 = vpop.f32.mrb[0].mxu0
  %v879 = vadd.f32 %v718, %v878
  %880 = vmatprep.mubr.bf16.mxu0 0
  %881 = vmatmul.mubr.bf16.gmra.mrb[0].mxu0 %v635
  %v882 = vpop.f32.mrb[0].mxu0
  %v883 = vadd.f32 %v722, %v882
  %v884 = vpop.f32.mrb[0].mxu0
  %v885 = vadd.f32 %v724, %v884
  %v886 = vpop.f32.mrb[0].mxu0
  %v887 = vadd.f32 %v726, %v886
  %v888 = vpop.f32.mrb[0].mxu0
  %v889 = vadd.f32 %v728, %v888
  %890 = vmatprep.mubr.bf16.mxu0 0
  %891 = vmatmul.mubr.bf16.gmra.mrb[0].mxu0 %v638
  %v892 = vpop.f32.mrb[0].mxu0
  %v893 = vadd.f32 %v732, %v892
  %v894 = vpop.f32.mrb[0].mxu0
  %v895 = vadd.f32 %v734, %v894
  %v896 = vpop.f32.mrb[0].mxu0
  %v897 = vadd.f32 %v736, %v896
  %v898 = vpop.f32.mrb[0].mxu0
  %v899 = vadd.f32 %v738, %v898
  %900 = vmatprep.mubr.bf16.mxu0 0
  %901 = vmatmul.mubr.bf16.gmra.mrb[0].mxu0 %v641
  %v902 = vpop.f32.mrb[0].mxu0
  %v903 = vadd.f32 %v742, %v902
  %v904 = vpop.f32.mrb[0].mxu0
  %v905 = vadd.f32 %v744, %v904
  %v906 = vpop.f32.mrb[0].mxu0
  %v907 = vadd.f32 %v746, %v906
  %v908 = vpop.f32.mrb[0].mxu0
  %v909 = vadd.f32 %v748, %v908
  %910 = vmatprep.mubr.bf16.mxu0 0
  %911 = vmatmul.mubr.bf16.gmra.mrb[0].mxu0 %v644
  %v912 = vpop.f32.mrb[0].mxu0
  %v913 = vadd.f32 %v752, %v912
  %v914 = vpop.f32.mrb[0].mxu0
  %v915 = vadd.f32 %v754, %v914
  %v916 = vpop.f32.mrb[0].mxu0
  %v917 = vadd.f32 %v756, %v916
  %v918 = vpop.f32.mrb[0].mxu0
  %v919 = vadd.f32 %v758, %v918
  %920 = vmatprep.mubr.bf16.mxu0 0
  %921 = vmatmul.mubr.bf16.gmra.mrb[0].mxu0 %v647
  %v922 = vpop.f32.mrb[0].mxu0
  %v923 = vadd.f32 %v762, %v922
  %v924 = vpop.f32.mrb[0].mxu0
  %v925 = vadd.f32 %v764, %v924
  %v926 = vpop.f32.mrb[0].mxu0
  %v927 = vadd.f32 %v766, %v926
  %v928 = vpop.f32.mrb[0].mxu0
  %v929 = vadd.f32 %v768, %v928
  %930 = vmatprep.mubr.bf16.mxu0 0
  %931 = vmatmul.mubr.bf16.gmra.mrb[0].mxu0 %v650
  %v932 = vpop.f32.mrb[0].mxu0
  %v933 = vadd.f32 %v772, %v932
  %v934 = vpop.f32.mrb[0].mxu0
  %v935 = vadd.f32 %v774, %v934
  %v936 = vpop.f32.mrb[0].mxu0
  %v937 = vadd.f32 %v776, %v936
  %v938 = vpop.f32.mrb[0].mxu0
  %v939 = vadd.f32 %v778, %v938
  %940 = vmatprep.mubr.bf16.mxu0 0
  %941 = vmatmul.mubr.bf16.gmra.mrb[0].mxu0 %v653
  %v942 = vpop.f32.mrb[0].mxu0
  %v943 = vadd.f32 %v782, %v942
  %v944 = vpop.f32.mrb[0].mxu0
  %v945 = vadd.f32 %v784, %v944
  %v946 = vpop.f32.mrb[0].mxu0
  %v947 = vadd.f32 %v786, %v946
  %v948 = vpop.f32.mrb[0].mxu0
  %v949 = vadd.f32 %v788, %v948
  %950 = vmatprep.mubr.bf16.mxu0 0
  %951 = vmatmul.mubr.bf16.gmra.mrb[0].mxu0 %v656
  %v952 = vpop.f32.mrb[0].mxu0
  %v953 = vadd.f32 %v792, %v952
  %v954 = vpop.f32.mrb[0].mxu0
  %v955 = vadd.f32 %v794, %v954
  %v956 = vpop.f32.mrb[0].mxu0
  %v957 = vadd.f32 %v796, %v956
  %v958 = vpop.f32.mrb[0].mxu0
  %v959 = vadd.f32 %v798, %v958
  %960 = vmatprep.mubr.bf16.mxu0 0
  %961 = vmatmul.mubr.bf16.gmra.mrb[0].mxu0 %v659
  %v962 = vpop.f32.mrb[0].mxu0
  %v963 = vadd.f32 %v802, %v962
  %v964 = vpop.f32.mrb[0].mxu0
  %v965 = vadd.f32 %v804, %v964
  %v966 = vpop.f32.mrb[0].mxu0
  %v967 = vadd.f32 %v806, %v966
  %v968 = vpop.f32.mrb[0].mxu0
  %v969 = vadd.f32 %v808, %v968
  %970 = vmatprep.mubr.bf16.mxu0 0
  %971 = vmatmul.mubr.bf16.gmra.mrb[0].mxu0 %v662
  %v972 = vpop.f32.mrb[0].mxu0
  %v973 = vadd.f32 %v812, %v972
  %v974 = vpop.f32.mrb[0].mxu0
  %v975 = vadd.f32 %v814, %v974
  %v976 = vpop.f32.mrb[0].mxu0
  %v977 = vadd.f32 %v816, %v976
  %v978 = vpop.f32.mrb[0].mxu0
  %v979 = vadd.f32 %v818, %v978
  %980 = vmatprep.mubr.bf16.mxu0 0
  %981 = vmatmul.mubr.bf16.gmra.mrb[0].mxu0 %v665
  %v982 = vpop.f32.mrb[0].mxu0
  %v983 = vadd.f32 %v822, %v982
  %v984 = vpop.f32.mrb[0].mxu0
  %v985 = vadd.f32 %v824, %v984
  %v986 = vpop.f32.mrb[0].mxu0
  %v987 = vpop.f32.mrb[0].mxu0
  %988 = vdwg.mxu0
  %989 = vmatprep.subr.bf16.mxu0 0
  %990 = vmatpush1.bf16.msra.mxu0 %v521
  %991 = vmatprep.subr.bf16.mxu0 0
  %992 = vmatpush1.bf16.msra.mxu0 %v524
  %993 = vmatprep.subr.bf16.mxu0 0
  %994 = vmatpush1.bf16.msra.mxu0 %v527
  %995 = vmatprep.subr.bf16.mxu0 0
  %996 = vmatpush1.bf16.msra.mxu0 %v530
  %997 = vmatprep.subr.bf16.mxu0 0
  %998 = vmatpush1.bf16.msra.mxu0 %v533
  %999 = vmatprep.subr.bf16.mxu0 0
  %1000 = vmatpush1.bf16.msra.mxu0 %v536
  %1001 = vmatprep.subr.bf16.mxu0 0
  %1002 = vmatpush1.bf16.msra.mxu0 %v539
  %1003 = vmatprep.subr.bf16.mxu0 0
  %1004 = vmatpush1.bf16.msra.mxu0 %v542
  %1005 = vmatprep.subr.bf16.mxu0 0
  %1006 = vmatpush1.bf16.msra.mxu0 %v545
  %1007 = vmatprep.subr.bf16.mxu0 0
  %1008 = vmatpush1.bf16.msra.mxu0 %v548
  %1009 = vmatprep.subr.bf16.mxu0 0
  %1010 = vmatpush1.bf16.msra.mxu0 %v551
  %1011 = vmatprep.subr.bf16.mxu0 0
  %1012 = vmatpush1.bf16.msra.mxu0 %v554
  %1013 = vmatprep.subr.bf16.mxu0 0
  %1014 = vmatpush1.bf16.msra.mxu0 %v557
  %1015 = vmatprep.subr.bf16.mxu0 0
  %1016 = vmatpush1.bf16.msra.mxu0 %v560
  %1017 = vmatprep.subr.bf16.mxu0 0
  %1018 = vmatpush1.bf16.msra.mxu0 %v563
  %1019 = vmatprep.subr.bf16.mxu0 0
  %1020 = vmatpush1.bf16.msra.mxu0 %v566
  %1021 = vmatprep.mubr.bf16.mxu0 %v275
  %1022 = vmatmul.mubr.bf16.gmra.mrb[0].mxu0 %v274
  %v1023 = vpop.f32.mrb[0].mxu0
  %v1024 = vadd.f32 0.0, %v1023
  %v1025 = vpop.f32.mrb[0].mxu0
  %v1026 = vpop.f32.mrb[0].mxu0
  %v1027 = vadd.f32 0.0, %v1026
  %v1028 = vpop.f32.mrb[0].mxu0
  %1029 = vmatprep.mubr.bf16.mxu0 %v278
  %1030 = vmatmul.mubr.bf16.gmra.mrb[0].mxu0 %v277
  %v1031 = vpop.f32.mrb[0].mxu0
  %v1032 = vadd.f32 0.0, %v1031
  %v1033 = vpop.f32.mrb[0].mxu0
  %v1034 = vpop.f32.mrb[0].mxu0
  %v1035 = vadd.f32 0.0, %v1034
  %v1036 = vpop.f32.mrb[0].mxu0
  %1037 = vmatprep.mubr.bf16.mxu0 %v281
  %1038 = vmatmul.mubr.bf16.gmra.mrb[0].mxu0 %v280
  %v1039 = vpop.f32.mrb[0].mxu0
  %v1040 = vadd.f32 0.0, %v1039
  %v1041 = vpop.f32.mrb[0].mxu0
  %v1042 = vpop.f32.mrb[0].mxu0
  %v1043 = vadd.f32 0.0, %v1042
  %v1044 = vpop.f32.mrb[0].mxu0
  %1045 = vmatprep.mubr.bf16.mxu0 %v284
  %1046 = vmatmul.mubr.bf16.gmra.mrb[0].mxu0 %v283
  %v1047 = vpop.f32.mrb[0].mxu0
  %v1048 = vadd.f32 0.0, %v1047
  %v1049 = vpop.f32.mrb[0].mxu0
  %v1050 = vpop.f32.mrb[0].mxu0
  %v1051 = vadd.f32 0.0, %v1050
  %v1052 = vpop.f32.mrb[0].mxu0
  %1053 = vmatprep.mubr.bf16.mxu0 %v287
  %1054 = vmatmul.mubr.bf16.gmra.mrb[0].mxu0 %v286
  %v1055 = vpop.f32.mrb[0].mxu0
  %v1056 = vadd.f32 0.0, %v1055
  %v1057 = vpop.f32.mrb[0].mxu0
  %v1058 = vpop.f32.mrb[0].mxu0
  %v1059 = vadd.f32 0.0, %v1058
  %v1060 = vpop.f32.mrb[0].mxu0
  %1061 = vmatprep.mubr.bf16.mxu0 %v290
  %1062 = vmatmul.mubr.bf16.gmra.mrb[0].mxu0 %v289
  %v1063 = vpop.f32.mrb[0].mxu0
  %v1064 = vadd.f32 0.0, %v1063
  %v1065 = vpop.f32.mrb[0].mxu0
  %v1066 = vpop.f32.mrb[0].mxu0
  %v1067 = vadd.f32 0.0, %v1066
  %v1068 = vpop.f32.mrb[0].mxu0
  %1069 = vmatprep.mubr.bf16.mxu0 %v293
  %1070 = vmatmul.mubr.bf16.gmra.mrb[0].mxu0 %v292
  %v1071 = vpop.f32.mrb[0].mxu0
  %v1072 = vadd.f32 0.0, %v1071
  %v1073 = vpop.f32.mrb[0].mxu0
  %v1074 = vpop.f32.mrb[0].mxu0
  %v1075 = vadd.f32 0.0, %v1074
  %v1076 = vpop.f32.mrb[0].mxu0
  %1077 = vmatprep.mubr.bf16.mxu0 %v296
  %1078 = vmatmul.mubr.bf16.gmra.mrb[0].mxu0 %v295
  %v1079 = vpop.f32.mrb[0].mxu0
  %v1080 = vadd.f32 0.0, %v1079
  %v1081 = vpop.f32.mrb[0].mxu0
  %v1082 = vpop.f32.mrb[0].mxu0
  %v1083 = vadd.f32 0.0, %v1082
  %v1084 = vpop.f32.mrb[0].mxu0
  %1085 = vmatprep.mubr.bf16.mxu0 %v299
  %1086 = vmatmul.mubr.bf16.gmra.mrb[0].mxu0 %v298
  %v1087 = vpop.f32.mrb[0].mxu0
  %v1088 = vadd.f32 0.0, %v1087
  %v1089 = vpop.f32.mrb[0].mxu0
  %v1090 = vpop.f32.mrb[0].mxu0
  %v1091 = vadd.f32 0.0, %v1090
  %v1092 = vpop.f32.mrb[0].mxu0
  %1093 = vmatprep.mubr.bf16.mxu0 %v302
  %1094 = vmatmul.mubr.bf16.gmra.mrb[0].mxu0 %v301
  %v1095 = vpop.f32.mrb[0].mxu0
  %v1096 = vadd.f32 0.0, %v1095
  %v1097 = vpop.f32.mrb[0].mxu0
  %v1098 = vpop.f32.mrb[0].mxu0
  %v1099 = vadd.f32 0.0, %v1098
  %v1100 = vpop.f32.mrb[0].mxu0
  %1101 = vmatprep.mubr.bf16.mxu0 %v305
  %1102 = vmatmul.mubr.bf16.gmra.mrb[0].mxu0 %v304
  %v1103 = vpop.f32.mrb[0].mxu0
  %v1104 = vadd.f32 0.0, %v1103
  %v1105 = vpop.f32.mrb[0].mxu0
  %v1106 = vpop.f32.mrb[0].mxu0
  %v1107 = vadd.f32 0.0, %v1106
  %v1108 = vpop.f32.mrb[0].mxu0
  %1109 = vmatprep.mubr.bf16.mxu0 %v308
  %1110 = vmatmul.mubr.bf16.gmra.mrb[0].mxu0 %v307
  %v1111 = vpop.f32.mrb[0].mxu0
  %v1112 = vadd.f32 0.0, %v1111
  %v1113 = vpop.f32.mrb[0].mxu0
  %v1114 = vpop.f32.mrb[0].mxu0
  %v1115 = vadd.f32 0.0, %v1114
  %v1116 = vpop.f32.mrb[0].mxu0
  %1117 = vmatprep.mubr.bf16.mxu0 %v311
  %1118 = vmatmul.mubr.bf16.gmra.mrb[0].mxu0 %v310
  %v1119 = vpop.f32.mrb[0].mxu0
  %v1120 = vadd.f32 0.0, %v1119
  %v1121 = vpop.f32.mrb[0].mxu0
  %v1122 = vpop.f32.mrb[0].mxu0
  %v1123 = vpop.f32.mrb[0].mxu0
  %1124 = vdwg.mxu0
  %1125 = vmatprep.subr.bf16.mxu0 0
  %1126 = vmatpush1.bf16.msra.mxu0 %v569
  %1127 = vmatprep.subr.bf16.mxu0 0
  %1128 = vmatpush1.bf16.msra.mxu0 %v572
  %1129 = vmatprep.subr.bf16.mxu0 0
  %1130 = vmatpush1.bf16.msra.mxu0 0
  %1131 = vmatprep.subr.bf16.mxu0 0
  %1132 = vmatpush1.bf16.msra.mxu0 0
  %1133 = vmatprep.subr.bf16.mxu0 0
  %1134 = vmatpush1.bf16.msra.mxu0 0
  %1135 = vmatprep.subr.bf16.mxu0 0
  %1136 = vmatpush1.bf16.msra.mxu0 0
  %1137 = vmatprep.subr.bf16.mxu0 0
  %1138 = vmatpush1.bf16.msra.mxu0 0
  %1139 = vmatprep.subr.bf16.mxu0 0
  %1140 = vmatpush1.bf16.msra.mxu0 0
  %1141 = vmatprep.subr.bf16.mxu0 0
  %1142 = vmatpush1.bf16.msra.mxu0 0
  %1143 = vmatprep.subr.bf16.mxu0 0
  %1144 = vmatpush1.bf16.msra.mxu0 0
  %1145 = vmatprep.subr.bf16.mxu0 0
  %1146 = vmatpush1.bf16.msra.mxu0 0
  %1147 = vmatprep.subr.bf16.mxu0 0
  %1148 = vmatpush1.bf16.msra.mxu0 0
  %1149 = vmatprep.subr.bf16.mxu0 0
  %1150 = vmatpush1.bf16.msra.mxu0 0
  %1151 = vmatprep.subr.bf16.mxu0 0
  %1152 = vmatpush1.bf16.msra.mxu0 0
  %1153 = vmatprep.subr.bf16.mxu0 0
  %1154 = vmatpush1.bf16.msra.mxu0 0
  %1155 = vmatprep.subr.bf16.mxu0 0
  %1156 = vmatpush1.bf16.msra.mxu0 0
  %1157 = vmatprep.mubr.bf16.mxu0 0
  %1158 = vmatmul.mubr.bf16.gmra.mrb[0].mxu0 %v629
  %v1159 = vpop.f32.mrb[0].mxu0
  %v1160 = vadd.f32 %v1024, %v1159
  %v1161 = vpop.f32.mrb[0].mxu0
  %v1162 = vpop.f32.mrb[0].mxu0
  %v1163 = vadd.f32 %v1027, %v1162
  %v1164 = vpop.f32.mrb[0].mxu0
  %1165 = vmatprep.mubr.bf16.mxu0 0
  %1166 = vmatmul.mubr.bf16.gmra.mrb[0].mxu0 %v632
  %v1167 = vpop.f32.mrb[0].mxu0
  %v1168 = vadd.f32 %v1032, %v1167
  %v1169 = vpop.f32.mrb[0].mxu0
  %v1170 = vpop.f32.mrb[0].mxu0
  %v1171 = vadd.f32 %v1035, %v1170
  %v1172 = vpop.f32.mrb[0].mxu0
  %1173 = vmatprep.mubr.bf16.mxu0 0
  %1174 = vmatmul.mubr.bf16.gmra.mrb[0].mxu0 %v635
  %v1175 = vpop.f32.mrb[0].mxu0
  %v1176 = vadd.f32 %v1040, %v1175
  %v1177 = vpop.f32.mrb[0].mxu0
  %v1178 = vpop.f32.mrb[0].mxu0
  %v1179 = vadd.f32 %v1043, %v1178
  %v1180 = vpop.f32.mrb[0].mxu0
  %1181 = vmatprep.mubr.bf16.mxu0 0
  %1182 = vmatmul.mubr.bf16.gmra.mrb[0].mxu0 %v638
  %v1183 = vpop.f32.mrb[0].mxu0
  %v1184 = vadd.f32 %v1048, %v1183
  %v1185 = vpop.f32.mrb[0].mxu0
  %v1186 = vpop.f32.mrb[0].mxu0
  %v1187 = vadd.f32 %v1051, %v1186
  %v1188 = vpop.f32.mrb[0].mxu0
  %1189 = vmatprep.mubr.bf16.mxu0 0
  %1190 = vmatmul.mubr.bf16.gmra.mrb[0].mxu0 %v641
  %v1191 = vpop.f32.mrb[0].mxu0
  %v1192 = vadd.f32 %v1056, %v1191
  %v1193 = vpop.f32.mrb[0].mxu0
  %v1194 = vpop.f32.mrb[0].mxu0
  %v1195 = vadd.f32 %v1059, %v1194
  %v1196 = vpop.f32.mrb[0].mxu0
  %1197 = vmatprep.mubr.bf16.mxu0 0
  %1198 = vmatmul.mubr.bf16.gmra.mrb[0].mxu0 %v644
  %v1199 = vpop.f32.mrb[0].mxu0
  %v1200 = vadd.f32 %v1064, %v1199
  %v1201 = vpop.f32.mrb[0].mxu0
  %v1202 = vpop.f32.mrb[0].mxu0
  %v1203 = vadd.f32 %v1067, %v1202
  %v1204 = vpop.f32.mrb[0].mxu0
  %1205 = vmatprep.mubr.bf16.mxu0 0
  %1206 = vmatmul.mubr.bf16.gmra.mrb[0].mxu0 %v647
  %v1207 = vpop.f32.mrb[0].mxu0
  %v1208 = vadd.f32 %v1072, %v1207
  %v1209 = vpop.f32.mrb[0].mxu0
  %v1210 = vpop.f32.mrb[0].mxu0
  %v1211 = vadd.f32 %v1075, %v1210
  %v1212 = vpop.f32.mrb[0].mxu0
  %1213 = vmatprep.mubr.bf16.mxu0 0
  %1214 = vmatmul.mubr.bf16.gmra.mrb[0].mxu0 %v650
  %v1215 = vpop.f32.mrb[0].mxu0
  %v1216 = vadd.f32 %v1080, %v1215
  %v1217 = vpop.f32.mrb[0].mxu0
  %v1218 = vpop.f32.mrb[0].mxu0
  %v1219 = vadd.f32 %v1083, %v1218
  %v1220 = vpop.f32.mrb[0].mxu0
  %1221 = vmatprep.mubr.bf16.mxu0 0
  %1222 = vmatmul.mubr.bf16.gmra.mrb[0].mxu0 %v653
  %v1223 = vpop.f32.mrb[0].mxu0
  %v1224 = vadd.f32 %v1088, %v1223
  %v1225 = vpop.f32.mrb[0].mxu0
  %v1226 = vpop.f32.mrb[0].mxu0
  %v1227 = vadd.f32 %v1091, %v1226
  %v1228 = vpop.f32.mrb[0].mxu0
  %1229 = vmatprep.mubr.bf16.mxu0 0
  %1230 = vmatmul.mubr.bf16.gmra.mrb[0].mxu0 %v656
  %v1231 = vpop.f32.mrb[0].mxu0
  %v1232 = vadd.f32 %v1096, %v1231
  %v1233 = vpop.f32.mrb[0].mxu0
  %v1234 = vpop.f32.mrb[0].mxu0
  %v1235 = vadd.f32 %v1099, %v1234
  %v1236 = vpop.f32.mrb[0].mxu0
  %1237 = vmatprep.mubr.bf16.mxu0 0
  %1238 = vmatmul.mubr.bf16.gmra.mrb[0].mxu0 %v659
  %v1239 = vpop.f32.mrb[0].mxu0
  %v1240 = vadd.f32 %v1104, %v1239
  %v1241 = vpop.f32.mrb[0].mxu0
  %v1242 = vpop.f32.mrb[0].mxu0
  %v1243 = vadd.f32 %v1107, %v1242
  %v1244 = vpop.f32.mrb[0].mxu0
  %1245 = vmatprep.mubr.bf16.mxu0 0
  %1246 = vmatmul.mubr.bf16.gmra.mrb[0].mxu0 %v662
  %v1247 = vpop.f32.mrb[0].mxu0
  %v1248 = vadd.f32 %v1112, %v1247
  %v1249 = vpop.f32.mrb[0].mxu0
  %v1250 = vpop.f32.mrb[0].mxu0
  %v1251 = vadd.f32 %v1115, %v1250
  %v1252 = vpop.f32.mrb[0].mxu0
  %1253 = vmatprep.mubr.bf16.mxu0 0
  %1254 = vmatmul.mubr.bf16.gmra.mrb[0].mxu0 %v665
  %v1255 = vpop.f32.mrb[0].mxu0
  %v1256 = vadd.f32 %v1120, %v1255
  %v1257 = vpop.f32.mrb[0].mxu0
  %v1258 = vpop.f32.mrb[0].mxu0
  %v1259 = vpop.f32.mrb[0].mxu0
  %1260 = vdwg.mxu0
  %v1261 = vadd.f32 %v863, %v867
  %v1262 = vadd.f32 %v1261, %v873
  %v1263 = vadd.f32 %v1262, %v877
  %v1264 = vadd.f32 %v1263, %v883
  %v1265 = vadd.f32 %v1264, %v887
  %v1266 = vadd.f32 %v1265, %v893
  %v1267 = vadd.f32 %v1266, %v897
  %v1268 = vadd.f32 %v1267, %v903
  %v1269 = vadd.f32 %v1268, %v907
  %v1270 = vadd.f32 %v1269, %v913
  %v1271 = vadd.f32 %v1270, %v917
  %v1272 = vadd.f32 %v1271, %v923
  %v1273 = vadd.f32 %v1272, %v927
  %v1274 = vadd.f32 %v1273, %v933
  %v1275 = vadd.f32 %v1274, %v937
  %v1276 = vadd.f32 %v1275, %v943
  %v1277 = vadd.f32 %v1276, %v947
  %v1278 = vadd.f32 %v1277, %v953
  %v1279 = vadd.f32 %v1278, %v957
  %v1280 = vadd.f32 %v1279, %v963
  %v1281 = vadd.f32 %v1280, %v967
  %v1282 = vadd.f32 %v1281, %v973
  %v1283 = vadd.f32 %v1282, %v977
  %vm1284 = vcmask 1043456
  %v1285 = vsel %vm1284, %v983, 0.0
  %v1286 = vadd.f32 %v1283, %v1285
  %v1287 = vrot.slane %v1286, 4
  %v1288 = vadd.f32 %v1286, %v1287
  %v1289 = vrot.slane %v1288, 2
  %v1290 = vadd.f32 %v1288, %v1289
  %v1291 = vrot.slane %v1290, 1
  %v1292 = vadd.f32 %v1290, %v1291
  %v1293 = vadd.f32 %v865, %v869
  %v1294 = vadd.f32 %v1293, %v875
  %v1295 = vadd.f32 %v1294, %v879
  %v1296 = vadd.f32 %v1295, %v885
  %v1297 = vadd.f32 %v1296, %v889
  %v1298 = vadd.f32 %v1297, %v895
  %v1299 = vadd.f32 %v1298, %v899
  %v1300 = vadd.f32 %v1299, %v905
  %v1301 = vadd.f32 %v1300, %v909
  %v1302 = vadd.f32 %v1301, %v915
  %v1303 = vadd.f32 %v1302, %v919
  %v1304 = vadd.f32 %v1303, %v925
  %v1305 = vadd.f32 %v1304, %v929
  %v1306 = vadd.f32 %v1305, %v935
  %v1307 = vadd.f32 %v1306, %v939
  %v1308 = vadd.f32 %v1307, %v945
  %v1309 = vadd.f32 %v1308, %v949
  %v1310 = vadd.f32 %v1309, %v955
  %v1311 = vadd.f32 %v1310, %v959
  %v1312 = vadd.f32 %v1311, %v965
  %v1313 = vadd.f32 %v1312, %v969
  %v1314 = vadd.f32 %v1313, %v975
  %v1315 = vadd.f32 %v1314, %v979
  %v1316 = vsel %vm1284, %v985, 0.0
  %v1317 = vadd.f32 %v1315, %v1316
  %v1318 = vrot.slane %v1317, 4
  %v1319 = vadd.f32 %v1317, %v1318
  %v1320 = vrot.slane %v1319, 2
  %v1321 = vadd.f32 %v1319, %v1320
  %v1322 = vrot.slane %v1321, 1
  %v1323 = vadd.f32 %v1321, %v1322
  %v1324 = vsel %vm627, %v1160, 0.0
  %v1325 = vsel %vm627, %v1163, 0.0
  %v1326 = vadd.f32 %v1324, %v1325
  %v1327 = vsel %vm627, %v1168, 0.0
  %v1328 = vadd.f32 %v1326, %v1327
  %v1329 = vsel %vm627, %v1171, 0.0
  %v1330 = vadd.f32 %v1328, %v1329
  %v1331 = vsel %vm627, %v1176, 0.0
  %v1332 = vadd.f32 %v1330, %v1331
  %v1333 = vsel %vm627, %v1179, 0.0
  %v1334 = vadd.f32 %v1332, %v1333
  %v1335 = vsel %vm627, %v1184, 0.0
  %v1336 = vadd.f32 %v1334, %v1335
  %v1337 = vsel %vm627, %v1187, 0.0
  %v1338 = vadd.f32 %v1336, %v1337
  %v1339 = vsel %vm627, %v1192, 0.0
  %v1340 = vadd.f32 %v1338, %v1339
  %v1341 = vsel %vm627, %v1195, 0.0
  %v1342 = vadd.f32 %v1340, %v1341
  %v1343 = vsel %vm627, %v1200, 0.0
  %v1344 = vadd.f32 %v1342, %v1343
  %v1345 = vsel %vm627, %v1203, 0.0
  %v1346 = vadd.f32 %v1344, %v1345
  %v1347 = vsel %vm627, %v1208, 0.0
  %v1348 = vadd.f32 %v1346, %v1347
  %v1349 = vsel %vm627, %v1211, 0.0
  %v1350 = vadd.f32 %v1348, %v1349
  %v1351 = vsel %vm627, %v1216, 0.0
  %v1352 = vadd.f32 %v1350, %v1351
  %v1353 = vsel %vm627, %v1219, 0.0
  %v1354 = vadd.f32 %v1352, %v1353
  %v1355 = vsel %vm627, %v1224, 0.0
  %v1356 = vadd.f32 %v1354, %v1355
  %v1357 = vsel %vm627, %v1227, 0.0
  %v1358 = vadd.f32 %v1356, %v1357
  %v1359 = vsel %vm627, %v1232, 0.0
  %v1360 = vadd.f32 %v1358, %v1359
  %v1361 = vsel %vm627, %v1235, 0.0
  %v1362 = vadd.f32 %v1360, %v1361
  %v1363 = vsel %vm627, %v1240, 0.0
  %v1364 = vadd.f32 %v1362, %v1363
  %v1365 = vsel %vm627, %v1243, 0.0
  %v1366 = vadd.f32 %v1364, %v1365
  %v1367 = vsel %vm627, %v1248, 0.0
  %v1368 = vadd.f32 %v1366, %v1367
  %v1369 = vsel %vm627, %v1251, 0.0
  %v1370 = vadd.f32 %v1368, %v1369
  %vm1371 = vcmask 257024
  %v1372 = vsel %vm1371, %v1256, 0.0
  %v1373 = vadd.f32 %v1370, %v1372
  %v1374 = vrot.slane %v1373, 4
  %v1375 = vadd.f32 %v1373, %v1374
  %v1376 = vrot.slane %v1375, 2
  %v1377 = vadd.f32 %v1375, %v1376
  %v1378 = vrot.slane %v1377, 1
  %v1379 = vadd.f32 %v1377, %v1378
  %v1380 = vmul.f32 %v863, %v863
  %v1381 = vmul.f32 %v865, %v865
  %v1382 = vmul.f32 %v1160, %v1160
  %v1383 = vmul.f32 %v867, %v867
  %v1384 = vmul.f32 %v869, %v869
  %v1385 = vmul.f32 %v1163, %v1163
  %v1386 = vmul.f32 %v873, %v873
  %v1387 = vmul.f32 %v875, %v875
  %v1388 = vmul.f32 %v1168, %v1168
  %v1389 = vmul.f32 %v877, %v877
  %v1390 = vmul.f32 %v879, %v879
  %v1391 = vmul.f32 %v1171, %v1171
  %v1392 = vmul.f32 %v883, %v883
  %v1393 = vmul.f32 %v885, %v885
  %v1394 = vmul.f32 %v1176, %v1176
  %v1395 = vmul.f32 %v887, %v887
  %v1396 = vmul.f32 %v889, %v889
  %v1397 = vmul.f32 %v1179, %v1179
  %v1398 = vmul.f32 %v893, %v893
  %v1399 = vmul.f32 %v895, %v895
  %v1400 = vmul.f32 %v1184, %v1184
  %v1401 = vmul.f32 %v897, %v897
  %v1402 = vmul.f32 %v899, %v899
  %v1403 = vmul.f32 %v1187, %v1187
  %v1404 = vmul.f32 %v903, %v903
  %v1405 = vmul.f32 %v905, %v905
  %v1406 = vmul.f32 %v1192, %v1192
  %v1407 = vmul.f32 %v907, %v907
  %v1408 = vmul.f32 %v909, %v909
  %v1409 = vmul.f32 %v1195, %v1195
  %v1410 = vmul.f32 %v913, %v913
  %v1411 = vmul.f32 %v915, %v915
  %v1412 = vmul.f32 %v1200, %v1200
  %v1413 = vmul.f32 %v917, %v917
  %v1414 = vmul.f32 %v919, %v919
  %v1415 = vmul.f32 %v1203, %v1203
  %v1416 = vmul.f32 %v923, %v923
  %v1417 = vmul.f32 %v925, %v925
  %v1418 = vmul.f32 %v1208, %v1208
  %v1419 = vmul.f32 %v927, %v927
  %v1420 = vmul.f32 %v929, %v929
  %v1421 = vmul.f32 %v1211, %v1211
  %v1422 = vmul.f32 %v933, %v933
  %v1423 = vmul.f32 %v935, %v935
  %v1424 = vmul.f32 %v1216, %v1216
  %v1425 = vmul.f32 %v937, %v937
  %v1426 = vmul.f32 %v939, %v939
  %v1427 = vmul.f32 %v1219, %v1219
  %v1428 = vmul.f32 %v943, %v943
  %v1429 = vmul.f32 %v945, %v945
  %v1430 = vmul.f32 %v1224, %v1224
  %v1431 = vmul.f32 %v947, %v947
  %v1432 = vmul.f32 %v949, %v949
  %v1433 = vmul.f32 %v1227, %v1227
  %v1434 = vmul.f32 %v953, %v953
  %v1435 = vmul.f32 %v955, %v955
  %v1436 = vmul.f32 %v1232, %v1232
  %v1437 = vmul.f32 %v957, %v957
  %v1438 = vmul.f32 %v959, %v959
  %v1439 = vmul.f32 %v1235, %v1235
  %v1440 = vmul.f32 %v963, %v963
  %v1441 = vmul.f32 %v965, %v965
  %v1442 = vmul.f32 %v1240, %v1240
  %v1443 = vmul.f32 %v967, %v967
  %v1444 = vmul.f32 %v969, %v969
  %v1445 = vmul.f32 %v1243, %v1243
  %v1446 = vmul.f32 %v973, %v973
  %v1447 = vmul.f32 %v975, %v975
  %v1448 = vmul.f32 %v1248, %v1248
  %v1449 = vmul.f32 %v977, %v977
  %v1450 = vmul.f32 %v979, %v979
  %v1451 = vmul.f32 %v1251, %v1251
  %v1452 = vmul.f32 %v983, %v983
  %v1453 = vmul.f32 %v985, %v985
  %v1454 = vmul.f32 %v1256, %v1256
  %v1455 = vadd.f32 %v1380, %v1383
  %v1456 = vadd.f32 %v1455, %v1386
  %v1457 = vadd.f32 %v1456, %v1389
  %v1458 = vadd.f32 %v1457, %v1392
  %v1459 = vadd.f32 %v1458, %v1395
  %v1460 = vadd.f32 %v1459, %v1398
  %v1461 = vadd.f32 %v1460, %v1401
  %v1462 = vadd.f32 %v1461, %v1404
  %v1463 = vadd.f32 %v1462, %v1407
  %v1464 = vadd.f32 %v1463, %v1410
  %v1465 = vadd.f32 %v1464, %v1413
  %v1466 = vadd.f32 %v1465, %v1416
  %v1467 = vadd.f32 %v1466, %v1419
  %v1468 = vadd.f32 %v1467, %v1422
  %v1469 = vadd.f32 %v1468, %v1425
  %v1470 = vadd.f32 %v1469, %v1428
  %v1471 = vadd.f32 %v1470, %v1431
  %v1472 = vadd.f32 %v1471, %v1434
  %v1473 = vadd.f32 %v1472, %v1437
  %v1474 = vadd.f32 %v1473, %v1440
  %v1475 = vadd.f32 %v1474, %v1443
  %v1476 = vadd.f32 %v1475, %v1446
  %v1477 = vadd.f32 %v1476, %v1449
  %v1478 = vsel %vm1284, %v1452, 0.0
  %v1479 = vadd.f32 %v1477, %v1478
  %v1480 = vrot.slane %v1479, 4
  %v1481 = vadd.f32 %v1479, %v1480
  %v1482 = vrot.slane %v1481, 2
  %v1483 = vadd.f32 %v1481, %v1482
  %v1484 = vrot.slane %v1483, 1
  %v1485 = vadd.f32 %v1483, %v1484
  %v1486 = vadd.f32 %v1381, %v1384
  %v1487 = vadd.f32 %v1486, %v1387
  %v1488 = vadd.f32 %v1487, %v1390
  %v1489 = vadd.f32 %v1488, %v1393
  %v1490 = vadd.f32 %v1489, %v1396
  %v1491 = vadd.f32 %v1490, %v1399
  %v1492 = vadd.f32 %v1491, %v1402
  %v1493 = vadd.f32 %v1492, %v1405
  %v1494 = vadd.f32 %v1493, %v1408
  %v1495 = vadd.f32 %v1494, %v1411
  %v1496 = vadd.f32 %v1495, %v1414
  %v1497 = vadd.f32 %v1496, %v1417
  %v1498 = vadd.f32 %v1497, %v1420
  %v1499 = vadd.f32 %v1498, %v1423
  %v1500 = vadd.f32 %v1499, %v1426
  %v1501 = vadd.f32 %v1500, %v1429
  %v1502 = vadd.f32 %v1501, %v1432
  %v1503 = vadd.f32 %v1502, %v1435
  %v1504 = vadd.f32 %v1503, %v1438
  %v1505 = vadd.f32 %v1504, %v1441
  %v1506 = vadd.f32 %v1505, %v1444
  %v1507 = vadd.f32 %v1506, %v1447
  %v1508 = vadd.f32 %v1507, %v1450
  %v1509 = vsel %vm1284, %v1453, 0.0
  %v1510 = vadd.f32 %v1508, %v1509
  %v1511 = vrot.slane %v1510, 4
  %v1512 = vadd.f32 %v1510, %v1511
  %v1513 = vrot.slane %v1512, 2
  %v1514 = vadd.f32 %v1512, %v1513
  %v1515 = vrot.slane %v1514, 1
  %v1516 = vadd.f32 %v1514, %v1515
  %v1517 = vsel %vm627, %v1382, 0.0
  %v1518 = vsel %vm627, %v1385, 0.0
  %v1519 = vadd.f32 %v1517, %v1518
  %v1520 = vsel %vm627, %v1388, 0.0
  %v1521 = vadd.f32 %v1519, %v1520
  %v1522 = vsel %vm627, %v1391, 0.0
  %v1523 = vadd.f32 %v1521, %v1522
  %v1524 = vsel %vm627, %v1394, 0.0
  %v1525 = vadd.f32 %v1523, %v1524
  %v1526 = vsel %vm627, %v1397, 0.0
  %v1527 = vadd.f32 %v1525, %v1526
  %v1528 = vsel %vm627, %v1400, 0.0
  %v1529 = vadd.f32 %v1527, %v1528
  %v1530 = vsel %vm627, %v1403, 0.0
  %v1531 = vadd.f32 %v1529, %v1530
  %v1532 = vsel %vm627, %v1406, 0.0
  %v1533 = vadd.f32 %v1531, %v1532
  %v1534 = vsel %vm627, %v1409, 0.0
  %v1535 = vadd.f32 %v1533, %v1534
  %v1536 = vsel %vm627, %v1412, 0.0
  %v1537 = vadd.f32 %v1535, %v1536
  %v1538 = vsel %vm627, %v1415, 0.0
  %v1539 = vadd.f32 %v1537, %v1538
  %v1540 = vsel %vm627, %v1418, 0.0
  %v1541 = vadd.f32 %v1539, %v1540
  %v1542 = vsel %vm627, %v1421, 0.0
  %v1543 = vadd.f32 %v1541, %v1542
  %v1544 = vsel %vm627, %v1424, 0.0
  %v1545 = vadd.f32 %v1543, %v1544
  %v1546 = vsel %vm627, %v1427, 0.0
  %v1547 = vadd.f32 %v1545, %v1546
  %v1548 = vsel %vm627, %v1430, 0.0
  %v1549 = vadd.f32 %v1547, %v1548
  %v1550 = vsel %vm627, %v1433, 0.0
  %v1551 = vadd.f32 %v1549, %v1550
  %v1552 = vsel %vm627, %v1436, 0.0
  %v1553 = vadd.f32 %v1551, %v1552
  %v1554 = vsel %vm627, %v1439, 0.0
  %v1555 = vadd.f32 %v1553, %v1554
  %v1556 = vsel %vm627, %v1442, 0.0
  %v1557 = vadd.f32 %v1555, %v1556
  %v1558 = vsel %vm627, %v1445, 0.0
  %v1559 = vadd.f32 %v1557, %v1558
  %v1560 = vsel %vm627, %v1448, 0.0
  %v1561 = vadd.f32 %v1559, %v1560
  %v1562 = vsel %vm627, %v1451, 0.0
  %v1563 = vadd.f32 %v1561, %v1562
  %v1564 = vsel %vm1371, %v1454, 0.0
  %v1565 = vadd.f32 %v1563, %v1564
  %v1566 = vrot.slane %v1565, 4
  %v1567 = vadd.f32 %v1565, %v1566
  %v1568 = vrot.slane %v1567, 2
  %v1569 = vadd.f32 %v1567, %v1568
  %v1570 = vrot.slane %v1569, 1
  %v1571 = vadd.f32 %v1569, %v1570
  %v1572 = vmul.f32 %v1292, 0.0051020407
  %v1573 = vmul.f32 %v1323, 0.0051020407
  %v1574 = vmul.f32 %v1379, 0.0051020407
  %v1575 = vmul.f32 %v1485, 0.0051020407
  %v1576 = vmul.f32 %v1516, 0.0051020407
  %v1577 = vmul.f32 %v1571, 0.0051020407
  %v1578 = vmul.f32 %v1572, %v1572
  %v1579 = vmul.f32 %v1573, %v1573
  %v1580 = vmul.f32 %v1574, %v1574
  %v1581 = vsub.f32 %v1575, %v1578
  %v1582 = vsub.f32 %v1576, %v1579
  %v1583 = vsub.f32 %v1577, %v1580
  %v1584 = vld [vmem:[%s4] sm:$0x7]
  %v1585 = vadd.f32 %v1581, 1e-05
  %v1586 = vadd.f32 %v1582, 1e-05
  %v1587 = vadd.f32 %v1583, 1e-05
  %v1588 = vrsqrt.pop %v1585
  %v1589 = vrsqrt.pop %v1586
  %v1590 = vrsqrt.pop %v1587
  %v1594 = vcombine.low %v1588, %v1589
  %v1596 = vunpack.c.l.s4 1966171168
  %v1597 = vunpack.c.0.s8 %v1596
  %v1598 = vlaneseq
  %v1599 = vshrl.u32 %v1598, 7
  %v1600 = vsub.s32 %v1597, %v1599
  %v1601 = vrot.slane %v1594, %v1600
  %v1603 = vunpack.c.l.s4 1966171168
  %v1604 = vunpack.c.0.s8 %v1603
  %v1605 = vlaneseq
  %v1606 = vshrl.u32 %v1605, 7
  %v1607 = vsub.s32 %v1604, %v1606
  %v1608 = vrot.slane %v1590, %v1607
  %v1609 = vcombine.low %v1601, %v1608
  %v1611 = vunpack.c.l.s4 1966171168
  %v1612 = vunpack.c.0.s8 %v1611
  %v1613 = vlaneseq
  %v1614 = vshrl.u32 %v1613, 7
  %v1615 = vsub.s32 %v1612, %v1614
  %v1616 = vrot.slane %v1609, %v1615
  %v1618 = vmul.f32 %v1584, %v1616
  %v1619 = vld [vmem:[%s5] sm:$0x7]
  %v1621 = vlaneseq
  %v1622 = vshrl.u32 %v1621, 7
  %v1623 = vsub.s32 0, %v1622
  %v1624 = vrot.slane %v1618, %v1623
  %v1625 = vlaneseq
  %v1626 = vshrl.u32 %v1625, 7
  %v1627 = vsub.s32 1, %v1626
  %v1628 = vrot.slane %v1618, %v1627
  %v1629 = vlaneseq
  %v1630 = vshrl.u32 %v1629, 7
  %v1631 = vsub.s32 2, %v1630
  %v1632 = vrot.slane %v1618, %v1631
  %v1636 = vmul.f32 %v1572, %v1624
  %v1637 = vmul.f32 %v1573, %v1628
  %v1638 = vmul.f32 %v1574, %v1632
  %v1642 = vcombine.low %v1636, %v1637
  %v1644 = vunpack.c.l.s4 1966171168
  %v1645 = vunpack.c.0.s8 %v1644
  %v1646 = vlaneseq
  %v1647 = vshrl.u32 %v1646, 7
  %v1648 = vsub.s32 %v1645, %v1647
  %v1649 = vrot.slane %v1642, %v1648
  %v1651 = vunpack.c.l.s4 1966171168
  %v1652 = vunpack.c.0.s8 %v1651
  %v1653 = vlaneseq
  %v1654 = vshrl.u32 %v1653, 7
  %v1655 = vsub.s32 %v1652, %v1654
  %v1656 = vrot.slane %v1638, %v1655
  %v1657 = vcombine.low %v1649, %v1656
  %v1659 = vunpack.c.l.s4 1966171168
  %v1660 = vunpack.c.0.s8 %v1659
  %v1661 = vlaneseq
  %v1662 = vshrl.u32 %v1661, 7
  %v1663 = vsub.s32 %v1660, %v1662
  %v1664 = vrot.slane %v1657, %v1663
  %v1666 = vsub.f32 %v1619, %v1664
  %v1667 = vld [vmem:[%s1] sm:$0xff]
  %v1668 = vld [vmem:[%s1 + $0x8] sm:$0xf]
  %v1669 = vld [vmem:[%s1 + $0xc] sm:$0xff]
  %v1670 = vld [vmem:[%s1 + $0x14] sm:$0xf]
  %v1671 = vld [vmem:[%s1 + $0x18] sm:$0xff]
  %v1672 = vld [vmem:[%s1 + $0x20] sm:$0xf]
  %v1673 = vld [vmem:[%s1 + $0x24] sm:$0xff]
  %v1674 = vld [vmem:[%s1 + $0x2c] sm:$0xf]
  %v1675 = vld [vmem:[%s1 + $0x30] sm:$0xff]
  %v1676 = vld [vmem:[%s1 + $0x38] sm:$0xf]
  %v1677 = vld [vmem:[%s1 + $0x3c] sm:$0xff]
  %v1678 = vld [vmem:[%s1 + $0x44] sm:$0xf]
  %v1679 = vld [vmem:[%s1 + $0x48] sm:$0x11]
  %v1680 = vld [vmem:[%s1 + $0x50] sm:$0x1]
  %v1695 = vunpack.c.l.b16 %v1667
  %v1696 = vunpack.c.h.b16 %v1667
  %v1697 = vunpack.c.l.b16 %v1668
  %v1698 = vunpack.c.l.b16 %v1669
  %v1699 = vunpack.c.h.b16 %v1669
  %v1700 = vunpack.c.l.b16 %v1670
  %v1701 = vunpack.c.l.b16 %v1671
  %v1702 = vunpack.c.h.b16 %v1671
  %v1703 = vunpack.c.l.b16 %v1672
  %v1704 = vunpack.c.l.b16 %v1673
  %v1705 = vunpack.c.h.b16 %v1673
  %v1706 = vunpack.c.l.b16 %v1674
  %v1707 = vunpack.c.l.b16 %v1675
  %v1708 = vunpack.c.h.b16 %v1675
  %v1709 = vunpack.c.l.b16 %v1676
  %v1710 = vunpack.c.l.b16 %v1677
  %v1711 = vunpack.c.h.b16 %v1677
  %v1712 = vunpack.c.l.b16 %v1678
  %v1713 = vunpack.c.l.b16 %v1679
  %v1714 = vunpack.c.h.b16 %v1679
  %v1715 = vunpack.c.l.b16 %v1680
  %v1716 = vpack.c.b16 %v1698, %v1695
  %v1717 = vpack.c.b16 %v1699, %v1696
  %v1718 = vpack.c.b16 %v1700, %v1697
  %v1719 = vpack.c.b16 %v1704, %v1701
  %v1720 = vpack.c.b16 %v1705, %v1702
  %v1721 = vpack.c.b16 %v1706, %v1703
  %v1722 = vpack.c.b16 %v1710, %v1707
  %v1723 = vpack.c.b16 %v1711, %v1708
  %v1724 = vpack.c.b16 %v1712, %v1709
  %v1725 = vpack.c.b16 %v1713, %v1713
  %v1726 = vpack.c.b16 %v1714, %v1714
  %v1727 = vpack.c.b16 %v1715, %v1715
  %v1737 = vsel %vm627, %v1718, 0
  %v1740 = vsel %vm627, %v1721, 0
  %v1743 = vsel %vm627, %v1724, 0
  %v1746 = vsel %vm627, %v1727, 0
  %1748 = vmatprep.subr.bf16.mxu0 %v520
  %1749 = vmatpush1.bf16.msra.mxu0 %v519
  %1750 = vmatprep.subr.bf16.mxu0 %v523
  %1751 = vmatpush1.bf16.msra.mxu0 %v522
  %1752 = vmatprep.subr.bf16.mxu0 %v526
  %1753 = vmatpush1.bf16.msra.mxu0 %v525
  %1754 = vmatprep.subr.bf16.mxu0 %v529
  %1755 = vmatpush1.bf16.msra.mxu0 %v528
  %1756 = vmatprep.subr.bf16.mxu0 %v532
  %1757 = vmatpush1.bf16.msra.mxu0 %v531
  %1758 = vmatprep.subr.bf16.mxu0 %v535
  %1759 = vmatpush1.bf16.msra.mxu0 %v534
  %1760 = vmatprep.subr.bf16.mxu0 %v538
  %1761 = vmatpush1.bf16.msra.mxu0 %v537
  %1762 = vmatprep.subr.bf16.mxu0 %v541
  %1763 = vmatpush1.bf16.msra.mxu0 %v540
  %1764 = vmatprep.subr.bf16.mxu0 %v544
  %1765 = vmatpush1.bf16.msra.mxu0 %v543
  %1766 = vmatprep.subr.bf16.mxu0 %v547
  %1767 = vmatpush1.bf16.msra.mxu0 %v546
  %1768 = vmatprep.subr.bf16.mxu0 %v550
  %1769 = vmatpush1.bf16.msra.mxu0 %v549
  %1770 = vmatprep.subr.bf16.mxu0 %v553
  %1771 = vmatpush1.bf16.msra.mxu0 %v552
  %1772 = vmatprep.subr.bf16.mxu0 %v556
  %1773 = vmatpush1.bf16.msra.mxu0 %v555
  %1774 = vmatprep.subr.bf16.mxu0 %v559
  %1775 = vmatpush1.bf16.msra.mxu0 %v558
  %1776 = vmatprep.subr.bf16.mxu0 %v562
  %1777 = vmatpush1.bf16.msra.mxu0 %v561
  %1778 = vmatprep.subr.bf16.mxu0 %v565
  %1779 = vmatpush1.bf16.msra.mxu0 %v564
  %1780 = vmatprep.mubr.bf16.mxu0 %v1717
  %1781 = vmatmul.mubr.bf16.gmra.mrb[0].mxu0 %v1716
  %v1782 = vpop.f32.mrb[0].mxu0
  %v1783 = vadd.f32 0.0, %v1782
  %v1784 = vpop.f32.mrb[0].mxu0
  %v1785 = vadd.f32 0.0, %v1784
  %v1786 = vpop.f32.mrb[0].mxu0
  %v1787 = vadd.f32 0.0, %v1786
  %v1788 = vpop.f32.mrb[0].mxu0
  %v1789 = vadd.f32 0.0, %v1788
  %1790 = vmatprep.mubr.bf16.mxu0 %v1720
  %1791 = vmatmul.mubr.bf16.gmra.mrb[0].mxu0 %v1719
  %v1792 = vpop.f32.mrb[0].mxu0
  %v1793 = vadd.f32 0.0, %v1792
  %v1794 = vpop.f32.mrb[0].mxu0
  %v1795 = vadd.f32 0.0, %v1794
  %v1796 = vpop.f32.mrb[0].mxu0
  %v1797 = vadd.f32 0.0, %v1796
  %v1798 = vpop.f32.mrb[0].mxu0
  %v1799 = vadd.f32 0.0, %v1798
  %1800 = vmatprep.mubr.bf16.mxu0 %v1723
  %1801 = vmatmul.mubr.bf16.gmra.mrb[0].mxu0 %v1722
  %v1802 = vpop.f32.mrb[0].mxu0
  %v1803 = vadd.f32 0.0, %v1802
  %v1804 = vpop.f32.mrb[0].mxu0
  %v1805 = vadd.f32 0.0, %v1804
  %v1806 = vpop.f32.mrb[0].mxu0
  %v1807 = vadd.f32 0.0, %v1806
  %v1808 = vpop.f32.mrb[0].mxu0
  %v1809 = vadd.f32 0.0, %v1808
  %1810 = vmatprep.mubr.bf16.mxu0 %v1726
  %1811 = vmatmul.mubr.bf16.gmra.mrb[0].mxu0 %v1725
  %v1812 = vpop.f32.mrb[0].mxu0
  %v1813 = vadd.f32 0.0, %v1812
  %v1814 = vpop.f32.mrb[0].mxu0
  %v1815 = vadd.f32 0.0, %v1814
  %v1816 = vpop.f32.mrb[0].mxu0
  %v1817 = vpop.f32.mrb[0].mxu0
  %1818 = vdwg.mxu0
  %1819 = vmatprep.subr.bf16.mxu0 %v568
  %1820 = vmatpush1.bf16.msra.mxu0 %v567
  %1821 = vmatprep.subr.bf16.mxu0 %v571
  %1822 = vmatpush1.bf16.msra.mxu0 %v570
  %1823 = vmatprep.subr.bf16.mxu0 0
  %1824 = vmatpush1.bf16.msra.mxu0 0
  %1825 = vmatprep.subr.bf16.mxu0 0
  %1826 = vmatpush1.bf16.msra.mxu0 0
  %1827 = vmatprep.subr.bf16.mxu0 0
  %1828 = vmatpush1.bf16.msra.mxu0 0
  %1829 = vmatprep.subr.bf16.mxu0 0
  %1830 = vmatpush1.bf16.msra.mxu0 0
  %1831 = vmatprep.subr.bf16.mxu0 0
  %1832 = vmatpush1.bf16.msra.mxu0 0
  %1833 = vmatprep.subr.bf16.mxu0 0
  %1834 = vmatpush1.bf16.msra.mxu0 0
  %1835 = vmatprep.subr.bf16.mxu0 0
  %1836 = vmatpush1.bf16.msra.mxu0 0
  %1837 = vmatprep.subr.bf16.mxu0 0
  %1838 = vmatpush1.bf16.msra.mxu0 0
  %1839 = vmatprep.subr.bf16.mxu0 0
  %1840 = vmatpush1.bf16.msra.mxu0 0
  %1841 = vmatprep.subr.bf16.mxu0 0
  %1842 = vmatpush1.bf16.msra.mxu0 0
  %1843 = vmatprep.subr.bf16.mxu0 0
  %1844 = vmatpush1.bf16.msra.mxu0 0
  %1845 = vmatprep.subr.bf16.mxu0 0
  %1846 = vmatpush1.bf16.msra.mxu0 0
  %1847 = vmatprep.subr.bf16.mxu0 0
  %1848 = vmatpush1.bf16.msra.mxu0 0
  %1849 = vmatprep.subr.bf16.mxu0 0
  %1850 = vmatpush1.bf16.msra.mxu0 0
  %1851 = vmatprep.mubr.bf16.mxu0 0
  %1852 = vmatmul.mubr.bf16.gmra.mrb[0].mxu0 %v1737
  %v1853 = vpop.f32.mrb[0].mxu0
  %v1854 = vadd.f32 %v1783, %v1853
  %v1855 = vpop.f32.mrb[0].mxu0
  %v1856 = vadd.f32 %v1785, %v1855
  %v1857 = vpop.f32.mrb[0].mxu0
  %v1858 = vadd.f32 %v1787, %v1857
  %v1859 = vpop.f32.mrb[0].mxu0
  %v1860 = vadd.f32 %v1789, %v1859
  %1861 = vmatprep.mubr.bf16.mxu0 0
  %1862 = vmatmul.mubr.bf16.gmra.mrb[0].mxu0 %v1740
  %v1863 = vpop.f32.mrb[0].mxu0
  %v1864 = vadd.f32 %v1793, %v1863
  %v1865 = vpop.f32.mrb[0].mxu0
  %v1866 = vadd.f32 %v1795, %v1865
  %v1867 = vpop.f32.mrb[0].mxu0
  %v1868 = vadd.f32 %v1797, %v1867
  %v1869 = vpop.f32.mrb[0].mxu0
  %v1870 = vadd.f32 %v1799, %v1869
  %1871 = vmatprep.mubr.bf16.mxu0 0
  %1872 = vmatmul.mubr.bf16.gmra.mrb[0].mxu0 %v1743
  %v1873 = vpop.f32.mrb[0].mxu0
  %v1874 = vadd.f32 %v1803, %v1873
  %v1875 = vpop.f32.mrb[0].mxu0
  %v1876 = vadd.f32 %v1805, %v1875
  %v1877 = vpop.f32.mrb[0].mxu0
  %v1878 = vadd.f32 %v1807, %v1877
  %v1879 = vpop.f32.mrb[0].mxu0
  %v1880 = vadd.f32 %v1809, %v1879
  %1881 = vmatprep.mubr.bf16.mxu0 0
  %1882 = vmatmul.mubr.bf16.gmra.mrb[0].mxu0 %v1746
  %v1883 = vpop.f32.mrb[0].mxu0
  %v1884 = vadd.f32 %v1813, %v1883
  %v1885 = vpop.f32.mrb[0].mxu0
  %v1886 = vadd.f32 %v1815, %v1885
  %v1887 = vpop.f32.mrb[0].mxu0
  %v1888 = vpop.f32.mrb[0].mxu0
  %1889 = vdwg.mxu0
  %1890 = vmatprep.subr.bf16.mxu0 0
  %1891 = vmatpush1.bf16.msra.mxu0 %v521
  %1892 = vmatprep.subr.bf16.mxu0 0
  %1893 = vmatpush1.bf16.msra.mxu0 %v524
  %1894 = vmatprep.subr.bf16.mxu0 0
  %1895 = vmatpush1.bf16.msra.mxu0 %v527
  %1896 = vmatprep.subr.bf16.mxu0 0
  %1897 = vmatpush1.bf16.msra.mxu0 %v530
  %1898 = vmatprep.subr.bf16.mxu0 0
  %1899 = vmatpush1.bf16.msra.mxu0 %v533
  %1900 = vmatprep.subr.bf16.mxu0 0
  %1901 = vmatpush1.bf16.msra.mxu0 %v536
  %1902 = vmatprep.subr.bf16.mxu0 0
  %1903 = vmatpush1.bf16.msra.mxu0 %v539
  %1904 = vmatprep.subr.bf16.mxu0 0
  %1905 = vmatpush1.bf16.msra.mxu0 %v542
  %1906 = vmatprep.subr.bf16.mxu0 0
  %1907 = vmatpush1.bf16.msra.mxu0 %v545
  %1908 = vmatprep.subr.bf16.mxu0 0
  %1909 = vmatpush1.bf16.msra.mxu0 %v548
  %1910 = vmatprep.subr.bf16.mxu0 0
  %1911 = vmatpush1.bf16.msra.mxu0 %v551
  %1912 = vmatprep.subr.bf16.mxu0 0
  %1913 = vmatpush1.bf16.msra.mxu0 %v554
  %1914 = vmatprep.subr.bf16.mxu0 0
  %1915 = vmatpush1.bf16.msra.mxu0 %v557
  %1916 = vmatprep.subr.bf16.mxu0 0
  %1917 = vmatpush1.bf16.msra.mxu0 %v560
  %1918 = vmatprep.subr.bf16.mxu0 0
  %1919 = vmatpush1.bf16.msra.mxu0 %v563
  %1920 = vmatprep.subr.bf16.mxu0 0
  %1921 = vmatpush1.bf16.msra.mxu0 %v566
  %1922 = vmatprep.mubr.bf16.mxu0 %v1717
  %1923 = vmatmul.mubr.bf16.gmra.mrb[0].mxu0 %v1716
  %v1924 = vpop.f32.mrb[0].mxu0
  %v1925 = vadd.f32 0.0, %v1924
  %v1926 = vpop.f32.mrb[0].mxu0
  %v1927 = vpop.f32.mrb[0].mxu0
  %v1928 = vadd.f32 0.0, %v1927
  %v1929 = vpop.f32.mrb[0].mxu0
  %1930 = vmatprep.mubr.bf16.mxu0 %v1720
  %1931 = vmatmul.mubr.bf16.gmra.mrb[0].mxu0 %v1719
  %v1932 = vpop.f32.mrb[0].mxu0
  %v1933 = vadd.f32 0.0, %v1932
  %v1934 = vpop.f32.mrb[0].mxu0
  %v1935 = vpop.f32.mrb[0].mxu0
  %v1936 = vadd.f32 0.0, %v1935
  %v1937 = vpop.f32.mrb[0].mxu0
  %1938 = vmatprep.mubr.bf16.mxu0 %v1723
  %1939 = vmatmul.mubr.bf16.gmra.mrb[0].mxu0 %v1722
  %v1940 = vpop.f32.mrb[0].mxu0
  %v1941 = vadd.f32 0.0, %v1940
  %v1942 = vpop.f32.mrb[0].mxu0
  %v1943 = vpop.f32.mrb[0].mxu0
  %v1944 = vadd.f32 0.0, %v1943
  %v1945 = vpop.f32.mrb[0].mxu0
  %1946 = vmatprep.mubr.bf16.mxu0 %v1726
  %1947 = vmatmul.mubr.bf16.gmra.mrb[0].mxu0 %v1725
  %v1948 = vpop.f32.mrb[0].mxu0
  %v1949 = vadd.f32 0.0, %v1948
  %v1950 = vpop.f32.mrb[0].mxu0
  %v1951 = vpop.f32.mrb[0].mxu0
  %v1952 = vpop.f32.mrb[0].mxu0
  %1953 = vdwg.mxu0
  %1954 = vmatprep.subr.bf16.mxu0 0
  %1955 = vmatpush1.bf16.msra.mxu0 %v569
  %1956 = vmatprep.subr.bf16.mxu0 0
  %1957 = vmatpush1.bf16.msra.mxu0 %v572
  %1958 = vmatprep.subr.bf16.mxu0 0
  %1959 = vmatpush1.bf16.msra.mxu0 0
  %1960 = vmatprep.subr.bf16.mxu0 0
  %1961 = vmatpush1.bf16.msra.mxu0 0
  %1962 = vmatprep.subr.bf16.mxu0 0
  %1963 = vmatpush1.bf16.msra.mxu0 0
  %1964 = vmatprep.subr.bf16.mxu0 0
  %1965 = vmatpush1.bf16.msra.mxu0 0
  %1966 = vmatprep.subr.bf16.mxu0 0
  %1967 = vmatpush1.bf16.msra.mxu0 0
  %1968 = vmatprep.subr.bf16.mxu0 0
  %1969 = vmatpush1.bf16.msra.mxu0 0
  %1970 = vmatprep.subr.bf16.mxu0 0
  %1971 = vmatpush1.bf16.msra.mxu0 0
  %1972 = vmatprep.subr.bf16.mxu0 0
  %1973 = vmatpush1.bf16.msra.mxu0 0
  %1974 = vmatprep.subr.bf16.mxu0 0
  %1975 = vmatpush1.bf16.msra.mxu0 0
  %1976 = vmatprep.subr.bf16.mxu0 0
  %1977 = vmatpush1.bf16.msra.mxu0 0
  %1978 = vmatprep.subr.bf16.mxu0 0
  %1979 = vmatpush1.bf16.msra.mxu0 0
  %1980 = vmatprep.subr.bf16.mxu0 0
  %1981 = vmatpush1.bf16.msra.mxu0 0
  %1982 = vmatprep.subr.bf16.mxu0 0
  %1983 = vmatpush1.bf16.msra.mxu0 0
  %1984 = vmatprep.subr.bf16.mxu0 0
  %1985 = vmatpush1.bf16.msra.mxu0 0
  %1986 = vmatprep.mubr.bf16.mxu0 0
  %1987 = vmatmul.mubr.bf16.gmra.mrb[0].mxu0 %v1737
  %v1988 = vpop.f32.mrb[0].mxu0
  %v1989 = vadd.f32 %v1925, %v1988
  %v1990 = vpop.f32.mrb[0].mxu0
  %v1991 = vpop.f32.mrb[0].mxu0
  %v1992 = vadd.f32 %v1928, %v1991
  %v1993 = vpop.f32.mrb[0].mxu0
  %1994 = vmatprep.mubr.bf16.mxu0 0
  %1995 = vmatmul.mubr.bf16.gmra.mrb[0].mxu0 %v1740
  %v1996 = vpop.f32.mrb[0].mxu0
  %v1997 = vadd.f32 %v1933, %v1996
  %v1998 = vpop.f32.mrb[0].mxu0
  %v1999 = vpop.f32.mrb[0].mxu0
  %v2000 = vadd.f32 %v1936, %v1999
  %v2001 = vpop.f32.mrb[0].mxu0
  %2002 = vmatprep.mubr.bf16.mxu0 0
  %2003 = vmatmul.mubr.bf16.gmra.mrb[0].mxu0 %v1743
  %v2004 = vpop.f32.mrb[0].mxu0
  %v2005 = vadd.f32 %v1941, %v2004
  %v2006 = vpop.f32.mrb[0].mxu0
  %v2007 = vpop.f32.mrb[0].mxu0
  %v2008 = vadd.f32 %v1944, %v2007
  %v2009 = vpop.f32.mrb[0].mxu0
  %2010 = vmatprep.mubr.bf16.mxu0 0
  %2011 = vmatmul.mubr.bf16.gmra.mrb[0].mxu0 %v1746
  %v2012 = vpop.f32.mrb[0].mxu0
  %v2013 = vadd.f32 %v1949, %v2012
  %v2014 = vpop.f32.mrb[0].mxu0
  %v2015 = vpop.f32.mrb[0].mxu0
  %v2016 = vpop.f32.mrb[0].mxu0
  %2017 = vdwg.mxu0
  %v2018 = vld [vmem:[%s2] sm:$0xff]
  %v2019 = vld [vmem:[%s2 + $0x8] sm:$0xff]
  %v2020 = vld [vmem:[%s2 + $0x10] sm:$0xff]
  %v2021 = vld [vmem:[%s2 + $0x18] sm:$0xff]
  %v2022 = vld [vmem:[%s2 + $0x20] sm:$0xff]
  %v2023 = vld [vmem:[%s2 + $0x28] sm:$0xff]
  %v2024 = vld [vmem:[%s2 + $0x30] sm:$0xff]
  %v2025 = vld [vmem:[%s2 + $0x38] sm:$0xff]
  %v2026 = vld [vmem:[%s2 + $0x40] sm:$0xff]
  %v2027 = vld [vmem:[%s2 + $0x48] sm:$0xff]
  %v2028 = vld [vmem:[%s2 + $0x50] sm:$0xff]
  %v2029 = vld [vmem:[%s2 + $0x58] sm:$0xff]
  %v2030 = vld [vmem:[%s2 + $0x60] sm:$0xff]
  %v2031 = vld [vmem:[%s2 + $0x68] sm:$0xff]
  %v2032 = vld [vmem:[%s2 + $0x70] sm:$0xff]
  %v2033 = vld [vmem:[%s2 + $0x78] sm:$0xff]
  %v2034 = vld [vmem:[%s2 + $0x80] sm:$0xff]
  %v2035 = vld [vmem:[%s2 + $0x88] sm:$0xff]
  %v2036 = vld [vmem:[%s2 + $0x90] sm:$0x1]
  %v2037 = vld [vmem:[%s2 + $0x98] sm:$0x1]
  %v2038 = vld [vmem:[%s2 + $0xa0] sm:$0x1]
  %v2039 = vmul.f32 %v1854, %v1624
  %v2040 = vmul.f32 %v1856, %v1628
  %v2041 = vmul.f32 %v1989, %v1632
  %v2042 = vmul.f32 %v1858, %v1624
  %v2043 = vmul.f32 %v1860, %v1628
  %v2044 = vmul.f32 %v1992, %v1632
  %v2045 = vmul.f32 %v1864, %v1624
  %v2046 = vmul.f32 %v1866, %v1628
  %v2047 = vmul.f32 %v1997, %v1632
  %v2048 = vmul.f32 %v1868, %v1624
  %v2049 = vmul.f32 %v1870, %v1628
  %v2050 = vmul.f32 %v2000, %v1632
  %v2051 = vmul.f32 %v1874, %v1624
  %v2052 = vmul.f32 %v1876, %v1628
  %v2053 = vmul.f32 %v2005, %v1632
  %v2054 = vmul.f32 %v1878, %v1624
  %v2055 = vmul.f32 %v1880, %v1628
  %v2056 = vmul.f32 %v2008, %v1632
  %v2057 = vmul.f32 %v1884, %v1624
  %v2058 = vmul.f32 %v1886, %v1628
  %v2059 = vmul.f32 %v2013, %v1632
  %v2060 = vadd.f32 %v2018, %v2039
  %v2061 = vadd.f32 %v2019, %v2040
  %v2062 = vadd.f32 %v2020, %v2041
  %v2063 = vadd.f32 %v2021, %v2042
  %v2064 = vadd.f32 %v2022, %v2043
  %v2065 = vadd.f32 %v2023, %v2044
  %v2066 = vadd.f32 %v2024, %v2045
  %v2067 = vadd.f32 %v2025, %v2046
  %v2068 = vadd.f32 %v2026, %v2047
  %v2069 = vadd.f32 %v2027, %v2048
  %v2070 = vadd.f32 %v2028, %v2049
  %v2071 = vadd.f32 %v2029, %v2050
  %v2072 = vadd.f32 %v2030, %v2051
  %v2073 = vadd.f32 %v2031, %v2052
  %v2074 = vadd.f32 %v2032, %v2053
  %v2075 = vadd.f32 %v2033, %v2054
  %v2076 = vadd.f32 %v2034, %v2055
  %v2077 = vadd.f32 %v2035, %v2056
  %v2078 = vadd.f32 %v2036, %v2057
  %v2079 = vadd.f32 %v2037, %v2058
  %v2080 = vadd.f32 %v2038, %v2059
  %v2082 = vlaneseq
  %v2083 = vshrl.u32 %v2082, 7
  %v2084 = vsub.s32 0, %v2083
  %v2085 = vrot.slane %v1666, %v2084
  %v2086 = vlaneseq
  %v2087 = vshrl.u32 %v2086, 7
  %v2088 = vsub.s32 1, %v2087
  %v2089 = vrot.slane %v1666, %v2088
  %v2090 = vlaneseq
  %v2091 = vshrl.u32 %v2090, 7
  %v2092 = vsub.s32 2, %v2091
  %v2093 = vrot.slane %v1666, %v2092
  %v2097 = vadd.f32 %v2060, %v2085
  %v2098 = vadd.f32 %v2061, %v2089
  %v2099 = vadd.f32 %v2062, %v2093
  %v2100 = vadd.f32 %v2063, %v2085
  %v2101 = vadd.f32 %v2064, %v2089
  %v2102 = vadd.f32 %v2065, %v2093
  %v2103 = vadd.f32 %v2066, %v2085
  %v2104 = vadd.f32 %v2067, %v2089
  %v2105 = vadd.f32 %v2068, %v2093
  %v2106 = vadd.f32 %v2069, %v2085
  %v2107 = vadd.f32 %v2070, %v2089
  %v2108 = vadd.f32 %v2071, %v2093
  %v2109 = vadd.f32 %v2072, %v2085
  %v2110 = vadd.f32 %v2073, %v2089
  %v2111 = vadd.f32 %v2074, %v2093
  %v2112 = vadd.f32 %v2075, %v2085
  %v2113 = vadd.f32 %v2076, %v2089
  %v2114 = vadd.f32 %v2077, %v2093
  %v2115 = vadd.f32 %v2078, %v2085
  %v2116 = vadd.f32 %v2079, %v2089
  %v2117 = vadd.f32 %v2080, %v2093
  %v2118 = vmax.f32 %v2097, 0.0
  %v2119 = vmax.f32 %v2098, 0.0
  %v2120 = vmax.f32 %v2099, 0.0
  %v2121 = vmax.f32 %v2100, 0.0
  %v2122 = vmax.f32 %v2101, 0.0
  %v2123 = vmax.f32 %v2102, 0.0
  %v2124 = vmax.f32 %v2103, 0.0
  %v2125 = vmax.f32 %v2104, 0.0
  %v2126 = vmax.f32 %v2105, 0.0
  %v2127 = vmax.f32 %v2106, 0.0
  %v2128 = vmax.f32 %v2107, 0.0
  %v2129 = vmax.f32 %v2108, 0.0
  %v2130 = vmax.f32 %v2109, 0.0
  %v2131 = vmax.f32 %v2110, 0.0
  %v2132 = vmax.f32 %v2111, 0.0
  %v2133 = vmax.f32 %v2112, 0.0
  %v2134 = vmax.f32 %v2113, 0.0
  %v2135 = vmax.f32 %v2114, 0.0
  %v2136 = vmax.f32 %v2115, 0.0
  %v2137 = vmax.f32 %v2116, 0.0
  %v2138 = vmax.f32 %v2117, 0.0
  %v2139 = vpack.c.bf16 %v2121, %v2118
  %v2140 = vpack.c.bf16 %v2122, %v2119
  %v2141 = vpack.c.bf16 %v2123, %v2120
  %v2142 = vpack.c.bf16 %v2127, %v2124
  %v2143 = vpack.c.bf16 %v2128, %v2125
  %v2144 = vpack.c.bf16 %v2129, %v2126
  %v2145 = vpack.c.bf16 %v2133, %v2130
  %v2146 = vpack.c.bf16 %v2134, %v2131
  %v2147 = vpack.c.bf16 %v2135, %v2132
  %v2148 = vpack.c.bf16 %v2136, %v2136
  %v2149 = vpack.c.bf16 %v2137, %v2137
  %v2150 = vpack.c.bf16 %v2138, %v2138
  %v2151 = vld [vmem:[%s6] sm:$0xff]
  %v2152 = vld [vmem:[%s6 + $0x8] sm:$0xff]
  %v2153 = vld [vmem:[%s6 + $0x10] sm:$0xff]
  %v2154 = vld [vmem:[%s6 + $0x18] sm:$0xff]
  %v2155 = vld [vmem:[%s6 + $0x20] sm:$0xff]
  %v2156 = vld [vmem:[%s6 + $0x28] sm:$0xff]
  %v2157 = vld [vmem:[%s6 + $0x30] sm:$0xff]
  %v2158 = vld [vmem:[%s6 + $0x38] sm:$0xff]
  %v2159 = vld [vmem:[%s6 + $0x40] sm:$0xff]
  %v2160 = vld [vmem:[%s6 + $0x48] sm:$0xff]
  %v2161 = vld [vmem:[%s6 + $0x50] sm:$0xff]
  %v2162 = vld [vmem:[%s6 + $0x58] sm:$0xff]
  %v2163 = vld [vmem:[%s6 + $0x60] sm:$0xff]
  %v2164 = vld [vmem:[%s6 + $0x68] sm:$0xff]
  %v2165 = vld [vmem:[%s6 + $0x70] sm:$0xff]
  %v2166 = vld [vmem:[%s6 + $0x78] sm:$0xff]
  %v2167 = vld [vmem:[%s6 + $0x80] sm:$0xff]
  %v2168 = vld [vmem:[%s6 + $0x88] sm:$0xff]
  %v2169 = vld [vmem:[%s6 + $0x90] sm:$0xff]
  %v2170 = vld [vmem:[%s6 + $0x98] sm:$0xff]
  %v2171 = vld [vmem:[%s6 + $0xa0] sm:$0xff]
  %v2172 = vld [vmem:[%s6 + $0xa8] sm:$0xff]
  %v2173 = vld [vmem:[%s6 + $0xb0] sm:$0xff]
  %v2174 = vld [vmem:[%s6 + $0xb8] sm:$0xff]
  %v2175 = vld [vmem:[%s6 + $0xc0] sm:$0xff]
  %v2176 = vld [vmem:[%s6 + $0xc8] sm:$0xff]
  %v2177 = vld [vmem:[%s6 + $0xd0] sm:$0xff]
  %v2178 = vld [vmem:[%s6 + $0xd8] sm:$0xff]
  %v2179 = vld [vmem:[%s6 + $0xe0] sm:$0xff]
  %v2180 = vld [vmem:[%s6 + $0xe8] sm:$0xff]
  %v2181 = vld [vmem:[%s6 + $0xf0] sm:$0xff]
  %v2182 = vld [vmem:[%s6 + $0xf8] sm:$0xff]
  %v2183 = vld [vmem:[%s6 + $0x100] sm:$0xff]
  %v2184 = vld [vmem:[%s6 + $0x108] sm:$0xff]
  %v2185 = vld [vmem:[%s6 + $0x110] sm:$0xff]
  %v2186 = vld [vmem:[%s6 + $0x118] sm:$0xff]
  %v2187 = vld [vmem:[%s6 + $0x120] sm:$0xff]
  %v2188 = vld [vmem:[%s6 + $0x128] sm:$0xff]
  %v2189 = vld [vmem:[%s6 + $0x130] sm:$0xff]
  %v2190 = vld [vmem:[%s6 + $0x138] sm:$0xff]
  %v2191 = vld [vmem:[%s6 + $0x140] sm:$0xff]
  %v2192 = vld [vmem:[%s6 + $0x148] sm:$0xff]
  %v2193 = vld [vmem:[%s6 + $0x150] sm:$0xff]
  %v2194 = vld [vmem:[%s6 + $0x158] sm:$0xff]
  %v2195 = vld [vmem:[%s6 + $0x160] sm:$0xff]
  %v2196 = vld [vmem:[%s6 + $0x168] sm:$0xff]
  %v2197 = vld [vmem:[%s6 + $0x170] sm:$0xff]
  %v2198 = vld [vmem:[%s6 + $0x178] sm:$0xff]
  %v2199 = vld [vmem:[%s6 + $0x180] sm:$0xff]
  %v2200 = vld [vmem:[%s6 + $0x188] sm:$0xff]
  %v2201 = vld [vmem:[%s6 + $0x190] sm:$0xff]
  %v2202 = vld [vmem:[%s6 + $0x198] sm:$0xff]
  %v2203 = vld [vmem:[%s6 + $0x1a0] sm:$0xff]
  %v2204 = vld [vmem:[%s6 + $0x1a8] sm:$0xff]
  %v2205 = vld [vmem:[%s6 + $0x1b0] sm:$0xff]
  %v2206 = vld [vmem:[%s6 + $0x1b8] sm:$0xff]
  %v2207 = vld [vmem:[%s6 + $0x1c0] sm:$0xff]
  %v2208 = vld [vmem:[%s6 + $0x1c8] sm:$0xff]
  %v2209 = vld [vmem:[%s6 + $0x1d0] sm:$0xff]
  %v2210 = vld [vmem:[%s6 + $0x1d8] sm:$0xff]
  %v2211 = vld [vmem:[%s6 + $0x1e0] sm:$0xff]
  %v2212 = vld [vmem:[%s6 + $0x1e8] sm:$0xff]
  %v2213 = vld [vmem:[%s6 + $0x1f0] sm:$0xff]
  %v2214 = vld [vmem:[%s6 + $0x1f8] sm:$0xff]
  %v2215 = vld [vmem:[%s6 + $0x200] sm:$0xff]
  %v2216 = vld [vmem:[%s6 + $0x208] sm:$0xff]
  %v2217 = vld [vmem:[%s6 + $0x210] sm:$0xff]
  %v2218 = vld [vmem:[%s6 + $0x218] sm:$0xff]
  %v2219 = vld [vmem:[%s6 + $0x220] sm:$0xff]
  %v2220 = vld [vmem:[%s6 + $0x228] sm:$0xff]
  %v2221 = vld [vmem:[%s6 + $0x230] sm:$0xff]
  %v2222 = vld [vmem:[%s6 + $0x238] sm:$0xff]
  %v2223 = vld [vmem:[%s6 + $0x240] sm:$0xff]
  %v2224 = vld [vmem:[%s6 + $0x248] sm:$0xff]
  %v2225 = vld [vmem:[%s6 + $0x250] sm:$0xff]
  %v2226 = vld [vmem:[%s6 + $0x258] sm:$0xff]
  %v2227 = vld [vmem:[%s6 + $0x260] sm:$0xff]
  %v2228 = vld [vmem:[%s6 + $0x268] sm:$0xff]
  %v2229 = vld [vmem:[%s6 + $0x270] sm:$0xff]
  %v2230 = vld [vmem:[%s6 + $0x278] sm:$0xff]
  %v2231 = vld [vmem:[%s6 + $0x280] sm:$0xff]
  %v2232 = vld [vmem:[%s6 + $0x288] sm:$0xff]
  %v2233 = vld [vmem:[%s6 + $0x290] sm:$0xff]
  %v2234 = vld [vmem:[%s6 + $0x298] sm:$0xff]
  %v2235 = vld [vmem:[%s6 + $0x2a0] sm:$0xff]
  %v2236 = vld [vmem:[%s6 + $0x2a8] sm:$0xff]
  %v2237 = vld [vmem:[%s6 + $0x2b0] sm:$0xff]
  %v2238 = vld [vmem:[%s6 + $0x2b8] sm:$0xff]
  %v2239 = vld [vmem:[%s6 + $0x2c0] sm:$0xff]
  %v2240 = vld [vmem:[%s6 + $0x2c8] sm:$0xff]
  %v2241 = vld [vmem:[%s6 + $0x2d0] sm:$0xff]
  %v2242 = vld [vmem:[%s6 + $0x2d8] sm:$0xff]
  %v2243 = vld [vmem:[%s6 + $0x2e0] sm:$0xff]
  %v2244 = vld [vmem:[%s6 + $0x2e8] sm:$0xff]
  %v2245 = vld [vmem:[%s6 + $0x2f0] sm:$0xff]
  %v2246 = vld [vmem:[%s6 + $0x2f8] sm:$0xff]
  %v2247 = vld [vmem:[%s6 + $0x300] sm:$0xff]
  %v2248 = vld [vmem:[%s6 + $0x308] sm:$0xff]
  %v2249 = vld [vmem:[%s6 + $0x310] sm:$0xff]
  %v2250 = vld [vmem:[%s6 + $0x318] sm:$0xff]
  %v2251 = vld [vmem:[%s6 + $0x320] sm:$0xff]
  %v2252 = vld [vmem:[%s6 + $0x328] sm:$0xff]
  %v2253 = vld [vmem:[%s6 + $0x330] sm:$0xff]
  %v2254 = vld [vmem:[%s6 + $0x338] sm:$0xff]
  %v2255 = vld [vmem:[%s6 + $0x340] sm:$0xff]
  %v2256 = vld [vmem:[%s6 + $0x348] sm:$0xff]
  %v2257 = vld [vmem:[%s6 + $0x350] sm:$0xff]
  %v2258 = vld [vmem:[%s6 + $0x358] sm:$0xff]
  %v2367 = vunpack.c.l.b16 %v2151
  %v2368 = vunpack.c.h.b16 %v2151
  %v2369 = vunpack.c.l.b16 %v2152
  %v2370 = vunpack.c.h.b16 %v2152
  %v2371 = vunpack.c.l.b16 %v2153
  %v2372 = vunpack.c.h.b16 %v2153
  %v2373 = vunpack.c.l.b16 %v2154
  %v2374 = vunpack.c.h.b16 %v2154
  %v2375 = vunpack.c.l.b16 %v2155
  %v2376 = vunpack.c.h.b16 %v2155
  %v2377 = vunpack.c.l.b16 %v2156
  %v2378 = vunpack.c.h.b16 %v2156
  %v2379 = vunpack.c.l.b16 %v2157
  %v2380 = vunpack.c.h.b16 %v2157
  %v2381 = vunpack.c.l.b16 %v2158
  %v2382 = vunpack.c.h.b16 %v2158
  %v2383 = vunpack.c.l.b16 %v2159
  %v2384 = vunpack.c.h.b16 %v2159
  %v2385 = vunpack.c.l.b16 %v2160
  %v2386 = vunpack.c.h.b16 %v2160
  %v2387 = vunpack.c.l.b16 %v2161
  %v2388 = vunpack.c.h.b16 %v2161
  %v2389 = vunpack.c.l.b16 %v2162
  %v2390 = vunpack.c.h.b16 %v2162
  %v2391 = vunpack.c.l.b16 %v2163
  %v2392 = vunpack.c.h.b16 %v2163
  %v2393 = vunpack.c.l.b16 %v2164
  %v2394 = vunpack.c.h.b16 %v2164
  %v2395 = vunpack.c.l.b16 %v2165
  %v2396 = vunpack.c.h.b16 %v2165
  %v2397 = vunpack.c.l.b16 %v2166
  %v2398 = vunpack.c.h.b16 %v2166
  %v2399 = vunpack.c.l.b16 %v2167
  %v2400 = vunpack.c.h.b16 %v2167
  %v2401 = vunpack.c.l.b16 %v2168
  %v2402 = vunpack.c.h.b16 %v2168
  %v2403 = vunpack.c.l.b16 %v2169
  %v2404 = vunpack.c.h.b16 %v2169
  %v2405 = vunpack.c.l.b16 %v2170
  %v2406 = vunpack.c.h.b16 %v2170
  %v2407 = vunpack.c.l.b16 %v2171
  %v2408 = vunpack.c.h.b16 %v2171
  %v2409 = vunpack.c.l.b16 %v2172
  %v2410 = vunpack.c.h.b16 %v2172
  %v2411 = vunpack.c.l.b16 %v2173
  %v2412 = vunpack.c.h.b16 %v2173
  %v2413 = vunpack.c.l.b16 %v2174
  %v2414 = vunpack.c.h.b16 %v2174
  %v2415 = vunpack.c.l.b16 %v2175
  %v2416 = vunpack.c.h.b16 %v2175
  %v2417 = vunpack.c.l.b16 %v2176
  %v2418 = vunpack.c.h.b16 %v2176
  %v2419 = vunpack.c.l.b16 %v2177
  %v2420 = vunpack.c.h.b16 %v2177
  %v2421 = vunpack.c.l.b16 %v2178
  %v2422 = vunpack.c.h.b16 %v2178
  %v2423 = vunpack.c.l.b16 %v2179
  %v2424 = vunpack.c.h.b16 %v2179
  %v2425 = vunpack.c.l.b16 %v2180
  %v2426 = vunpack.c.h.b16 %v2180
  %v2427 = vunpack.c.l.b16 %v2181
  %v2428 = vunpack.c.h.b16 %v2181
  %v2429 = vunpack.c.l.b16 %v2182
  %v2430 = vunpack.c.h.b16 %v2182
  %v2431 = vunpack.c.l.b16 %v2183
  %v2432 = vunpack.c.h.b16 %v2183
  %v2433 = vunpack.c.l.b16 %v2184
  %v2434 = vunpack.c.h.b16 %v2184
  %v2435 = vunpack.c.l.b16 %v2185
  %v2436 = vunpack.c.h.b16 %v2185
  %v2437 = vunpack.c.l.b16 %v2186
  %v2438 = vunpack.c.h.b16 %v2186
  %v2439 = vunpack.c.l.b16 %v2187
  %v2440 = vunpack.c.h.b16 %v2187
  %v2441 = vunpack.c.l.b16 %v2188
  %v2442 = vunpack.c.h.b16 %v2188
  %v2443 = vunpack.c.l.b16 %v2189
  %v2444 = vunpack.c.h.b16 %v2189
  %v2445 = vunpack.c.l.b16 %v2190
  %v2446 = vunpack.c.h.b16 %v2190
  %v2447 = vunpack.c.l.b16 %v2191
  %v2448 = vunpack.c.h.b16 %v2191
  %v2449 = vunpack.c.l.b16 %v2192
  %v2450 = vunpack.c.h.b16 %v2192
  %v2451 = vunpack.c.l.b16 %v2193
  %v2452 = vunpack.c.h.b16 %v2193
  %v2453 = vunpack.c.l.b16 %v2194
  %v2454 = vunpack.c.h.b16 %v2194
  %v2455 = vunpack.c.l.b16 %v2195
  %v2456 = vunpack.c.h.b16 %v2195
  %v2457 = vunpack.c.l.b16 %v2196
  %v2458 = vunpack.c.h.b16 %v2196
  %v2459 = vunpack.c.l.b16 %v2197
  %v2460 = vunpack.c.h.b16 %v2197
  %v2461 = vunpack.c.l.b16 %v2198
  %v2462 = vunpack.c.h.b16 %v2198
  %v2463 = vunpack.c.l.b16 %v2199
  %v2464 = vunpack.c.h.b16 %v2199
  %v2465 = vunpack.c.l.b16 %v2200
  %v2466 = vunpack.c.h.b16 %v2200
  %v2467 = vunpack.c.l.b16 %v2201
  %v2468 = vunpack.c.h.b16 %v2201
  %v2469 = vunpack.c.l.b16 %v2202
  %v2470 = vunpack.c.h.b16 %v2202
  %v2471 = vunpack.c.l.b16 %v2203
  %v2472 = vunpack.c.h.b16 %v2203
  %v2473 = vunpack.c.l.b16 %v2204
  %v2474 = vunpack.c.h.b16 %v2204
  %v2475 = vunpack.c.l.b16 %v2205
  %v2476 = vunpack.c.h.b16 %v2205
  %v2477 = vunpack.c.l.b16 %v2206
  %v2478 = vunpack.c.h.b16 %v2206
  %v2479 = vunpack.c.l.b16 %v2207
  %v2480 = vunpack.c.h.b16 %v2207
  %v2481 = vunpack.c.l.b16 %v2208
  %v2482 = vunpack.c.h.b16 %v2208
  %v2483 = vunpack.c.l.b16 %v2209
  %v2484 = vunpack.c.h.b16 %v2209
  %v2485 = vunpack.c.l.b16 %v2210
  %v2486 = vunpack.c.h.b16 %v2210
  %v2487 = vunpack.c.l.b16 %v2211
  %v2488 = vunpack.c.h.b16 %v2211
  %v2489 = vunpack.c.l.b16 %v2212
  %v2490 = vunpack.c.h.b16 %v2212
  %v2491 = vunpack.c.l.b16 %v2213
  %v2492 = vunpack.c.h.b16 %v2213
  %v2493 = vunpack.c.l.b16 %v2214
  %v2494 = vunpack.c.h.b16 %v2214
  %v2495 = vunpack.c.l.b16 %v2215
  %v2496 = vunpack.c.h.b16 %v2215
  %v2497 = vunpack.c.l.b16 %v2216
  %v2498 = vunpack.c.h.b16 %v2216
  %v2499 = vunpack.c.l.b16 %v2217
  %v2500 = vunpack.c.h.b16 %v2217
  %v2501 = vunpack.c.l.b16 %v2218
  %v2502 = vunpack.c.h.b16 %v2218
  %v2503 = vunpack.c.l.b16 %v2219
  %v2504 = vunpack.c.h.b16 %v2219
  %v2505 = vunpack.c.l.b16 %v2220
  %v2506 = vunpack.c.h.b16 %v2220
  %v2507 = vunpack.c.l.b16 %v2221
  %v2508 = vunpack.c.h.b16 %v2221
  %v2509 = vunpack.c.l.b16 %v2222
  %v2510 = vunpack.c.h.b16 %v2222
  %v2511 = vunpack.c.l.b16 %v2223
  %v2512 = vunpack.c.h.b16 %v2223
  %v2513 = vunpack.c.l.b16 %v2224
  %v2514 = vunpack.c.h.b16 %v2224
  %v2515 = vunpack.c.l.b16 %v2225
  %v2516 = vunpack.c.h.b16 %v2225
  %v2517 = vunpack.c.l.b16 %v2226
  %v2518 = vunpack.c.h.b16 %v2226
  %v2519 = vunpack.c.l.b16 %v2227
  %v2520 = vunpack.c.h.b16 %v2227
  %v2521 = vunpack.c.l.b16 %v2228
  %v2522 = vunpack.c.h.b16 %v2228
  %v2523 = vunpack.c.l.b16 %v2229
  %v2524 = vunpack.c.h.b16 %v2229
  %v2525 = vunpack.c.l.b16 %v2230
  %v2526 = vunpack.c.h.b16 %v2230
  %v2527 = vunpack.c.l.b16 %v2231
  %v2528 = vunpack.c.h.b16 %v2231
  %v2529 = vunpack.c.l.b16 %v2232
  %v2530 = vunpack.c.h.b16 %v2232
  %v2531 = vunpack.c.l.b16 %v2233
  %v2532 = vunpack.c.h.b16 %v2233
  %v2533 = vunpack.c.l.b16 %v2234
  %v2534 = vunpack.c.h.b16 %v2234
  %v2535 = vunpack.c.l.b16 %v2235
  %v2536 = vunpack.c.h.b16 %v2235
  %v2537 = vunpack.c.l.b16 %v2236
  %v2538 = vunpack.c.h.b16 %v2236
  %v2539 = vunpack.c.l.b16 %v2237
  %v2540 = vunpack.c.h.b16 %v2237
  %v2541 = vunpack.c.l.b16 %v2238
  %v2542 = vunpack.c.h.b16 %v2238
  %v2543 = vunpack.c.l.b16 %v2239
  %v2544 = vunpack.c.h.b16 %v2239
  %v2545 = vunpack.c.l.b16 %v2240
  %v2546 = vunpack.c.h.b16 %v2240
  %v2547 = vunpack.c.l.b16 %v2241
  %v2548 = vunpack.c.h.b16 %v2241
  %v2549 = vunpack.c.l.b16 %v2242
  %v2550 = vunpack.c.h.b16 %v2242
  %v2551 = vunpack.c.l.b16 %v2243
  %v2552 = vunpack.c.h.b16 %v2243
  %v2553 = vunpack.c.l.b16 %v2244
  %v2554 = vunpack.c.h.b16 %v2244
  %v2555 = vunpack.c.l.b16 %v2245
  %v2556 = vunpack.c.h.b16 %v2245
  %v2557 = vunpack.c.l.b16 %v2246
  %v2558 = vunpack.c.h.b16 %v2246
  %v2559 = vunpack.c.l.b16 %v2247
  %v2560 = vunpack.c.h.b16 %v2247
  %v2561 = vunpack.c.l.b16 %v2248
  %v2562 = vunpack.c.h.b16 %v2248
  %v2563 = vunpack.c.l.b16 %v2249
  %v2564 = vunpack.c.h.b16 %v2249
  %v2565 = vunpack.c.l.b16 %v2250
  %v2566 = vunpack.c.h.b16 %v2250
  %v2567 = vunpack.c.l.b16 %v2251
  %v2568 = vunpack.c.h.b16 %v2251
  %v2569 = vunpack.c.l.b16 %v2252
  %v2570 = vunpack.c.h.b16 %v2252
  %v2571 = vunpack.c.l.b16 %v2253
  %v2572 = vunpack.c.h.b16 %v2253
  %v2573 = vunpack.c.l.b16 %v2254
  %v2574 = vunpack.c.h.b16 %v2254
  %v2575 = vunpack.c.l.b16 %v2255
  %v2576 = vunpack.c.h.b16 %v2255
  %v2577 = vunpack.c.l.b16 %v2256
  %v2578 = vunpack.c.h.b16 %v2256
  %v2579 = vunpack.c.l.b16 %v2257
  %v2580 = vunpack.c.h.b16 %v2257
  %v2581 = vunpack.c.l.b16 %v2258
  %v2582 = vunpack.c.h.b16 %v2258
  %v2583 = vpack.c.b16 %v2373, %v2367
  %v2584 = vpack.c.b16 %v2374, %v2368
  %v2585 = vpack.c.b16 %v2375, %v2369
  %v2586 = vpack.c.b16 %v2376, %v2370
  %v2587 = vpack.c.b16 %v2377, %v2371
  %v2588 = vpack.c.b16 %v2378, %v2372
  %v2589 = vpack.c.b16 %v2385, %v2379
  %v2590 = vpack.c.b16 %v2386, %v2380
  %v2591 = vpack.c.b16 %v2387, %v2381
  %v2592 = vpack.c.b16 %v2388, %v2382
  %v2593 = vpack.c.b16 %v2389, %v2383
  %v2594 = vpack.c.b16 %v2390, %v2384
  %v2595 = vpack.c.b16 %v2397, %v2391
  %v2596 = vpack.c.b16 %v2398, %v2392
  %v2597 = vpack.c.b16 %v2399, %v2393
  %v2598 = vpack.c.b16 %v2400, %v2394
  %v2599 = vpack.c.b16 %v2401, %v2395
  %v2600 = vpack.c.b16 %v2402, %v2396
  %v2601 = vpack.c.b16 %v2409, %v2403
  %v2602 = vpack.c.b16 %v2410, %v2404
  %v2603 = vpack.c.b16 %v2411, %v2405
  %v2604 = vpack.c.b16 %v2412, %v2406
  %v2605 = vpack.c.b16 %v2413, %v2407
  %v2606 = vpack.c.b16 %v2414, %v2408
  %v2607 = vpack.c.b16 %v2421, %v2415
  %v2608 = vpack.c.b16 %v2422, %v2416
  %v2609 = vpack.c.b16 %v2423, %v2417
  %v2610 = vpack.c.b16 %v2424, %v2418
  %v2611 = vpack.c.b16 %v2425, %v2419
  %v2612 = vpack.c.b16 %v2426, %v2420
  %v2613 = vpack.c.b16 %v2433, %v2427
  %v2614 = vpack.c.b16 %v2434, %v2428
  %v2615 = vpack.c.b16 %v2435, %v2429
  %v2616 = vpack.c.b16 %v2436, %v2430
  %v2617 = vpack.c.b16 %v2437, %v2431
  %v2618 = vpack.c.b16 %v2438, %v2432
  %v2619 = vpack.c.b16 %v2445, %v2439
  %v2620 = vpack.c.b16 %v2446, %v2440
  %v2621 = vpack.c.b16 %v2447, %v2441
  %v2622 = vpack.c.b16 %v2448, %v2442
  %v2623 = vpack.c.b16 %v2449, %v2443
  %v2624 = vpack.c.b16 %v2450, %v2444
  %v2625 = vpack.c.b16 %v2457, %v2451
  %v2626 = vpack.c.b16 %v2458, %v2452
  %v2627 = vpack.c.b16 %v2459, %v2453
  %v2628 = vpack.c.b16 %v2460, %v2454
  %v2629 = vpack.c.b16 %v2461, %v2455
  %v2630 = vpack.c.b16 %v2462, %v2456
  %v2631 = vpack.c.b16 %v2469, %v2463
  %v2632 = vpack.c.b16 %v2470, %v2464
  %v2633 = vpack.c.b16 %v2471, %v2465
  %v2634 = vpack.c.b16 %v2472, %v2466
  %v2635 = vpack.c.b16 %v2473, %v2467
  %v2636 = vpack.c.b16 %v2474, %v2468
  %v2637 = vpack.c.b16 %v2481, %v2475
  %v2638 = vpack.c.b16 %v2482, %v2476
  %v2639 = vpack.c.b16 %v2483, %v2477
  %v2640 = vpack.c.b16 %v2484, %v2478
  %v2641 = vpack.c.b16 %v2485, %v2479
  %v2642 = vpack.c.b16 %v2486, %v2480
  %v2643 = vpack.c.b16 %v2493, %v2487
  %v2644 = vpack.c.b16 %v2494, %v2488
  %v2645 = vpack.c.b16 %v2495, %v2489
  %v2646 = vpack.c.b16 %v2496, %v2490
  %v2647 = vpack.c.b16 %v2497, %v2491
  %v2648 = vpack.c.b16 %v2498, %v2492
  %v2649 = vpack.c.b16 %v2505, %v2499
  %v2650 = vpack.c.b16 %v2506, %v2500
  %v2651 = vpack.c.b16 %v2507, %v2501
  %v2652 = vpack.c.b16 %v2508, %v2502
  %v2653 = vpack.c.b16 %v2509, %v2503
  %v2654 = vpack.c.b16 %v2510, %v2504
  %v2655 = vpack.c.b16 %v2517, %v2511
  %v2656 = vpack.c.b16 %v2518, %v2512
  %v2657 = vpack.c.b16 %v2519, %v2513
  %v2658 = vpack.c.b16 %v2520, %v2514
  %v2659 = vpack.c.b16 %v2521, %v2515
  %v2660 = vpack.c.b16 %v2522, %v2516
  %v2661 = vpack.c.b16 %v2529, %v2523
  %v2662 = vpack.c.b16 %v2530, %v2524
  %v2663 = vpack.c.b16 %v2531, %v2525
  %v2664 = vpack.c.b16 %v2532, %v2526
  %v2665 = vpack.c.b16 %v2533, %v2527
  %v2666 = vpack.c.b16 %v2534, %v2528
  %v2667 = vpack.c.b16 %v2541, %v2535
  %v2668 = vpack.c.b16 %v2542, %v2536
  %v2669 = vpack.c.b16 %v2543, %v2537
  %v2670 = vpack.c.b16 %v2544, %v2538
  %v2671 = vpack.c.b16 %v2545, %v2539
  %v2672 = vpack.c.b16 %v2546, %v2540
  %v2673 = vpack.c.b16 %v2553, %v2547
  %v2674 = vpack.c.b16 %v2554, %v2548
  %v2675 = vpack.c.b16 %v2555, %v2549
  %v2676 = vpack.c.b16 %v2556, %v2550
  %v2677 = vpack.c.b16 %v2557, %v2551
  %v2678 = vpack.c.b16 %v2558, %v2552
  %v2679 = vpack.c.b16 %v2565, %v2559
  %v2680 = vpack.c.b16 %v2566, %v2560
  %v2681 = vpack.c.b16 %v2567, %v2561
  %v2682 = vpack.c.b16 %v2568, %v2562
  %v2683 = vpack.c.b16 %v2569, %v2563
  %v2684 = vpack.c.b16 %v2570, %v2564
  %v2685 = vpack.c.b16 %v2577, %v2571
  %v2686 = vpack.c.b16 %v2578, %v2572
  %v2687 = vpack.c.b16 %v2579, %v2573
  %v2688 = vpack.c.b16 %v2580, %v2574
  %v2689 = vpack.c.b16 %v2581, %v2575
  %v2690 = vpack.c.b16 %v2582, %v2576
  %v2800 = vsel %vm627, %v2141, 0
  %v2803 = vsel %vm627, %v2144, 0
  %v2806 = vsel %vm627, %v2147, 0
  %v2809 = vsel %vm627, %v2150, 0
  %2811 = vmatprep.subr.bf16.mxu0 %v2584
  %2812 = vmatpush1.bf16.msra.mxu0 %v2583
  %2813 = vmatprep.subr.bf16.mxu0 %v2590
  %2814 = vmatpush1.bf16.msra.mxu0 %v2589
  %2815 = vmatprep.subr.bf16.mxu0 %v2596
  %2816 = vmatpush1.bf16.msra.mxu0 %v2595
  %2817 = vmatprep.subr.bf16.mxu0 %v2602
  %2818 = vmatpush1.bf16.msra.mxu0 %v2601
  %2819 = vmatprep.subr.bf16.mxu0 %v2608
  %2820 = vmatpush1.bf16.msra.mxu0 %v2607
  %2821 = vmatprep.subr.bf16.mxu0 %v2614
  %2822 = vmatpush1.bf16.msra.mxu0 %v2613
  %2823 = vmatprep.subr.bf16.mxu0 %v2620
  %2824 = vmatpush1.bf16.msra.mxu0 %v2619
  %2825 = vmatprep.subr.bf16.mxu0 %v2626
  %2826 = vmatpush1.bf16.msra.mxu0 %v2625
  %2827 = vmatprep.subr.bf16.mxu0 %v2632
  %2828 = vmatpush1.bf16.msra.mxu0 %v2631
  %2829 = vmatprep.subr.bf16.mxu0 %v2638
  %2830 = vmatpush1.bf16.msra.mxu0 %v2637
  %2831 = vmatprep.subr.bf16.mxu0 %v2644
  %2832 = vmatpush1.bf16.msra.mxu0 %v2643
  %2833 = vmatprep.subr.bf16.mxu0 %v2650
  %2834 = vmatpush1.bf16.msra.mxu0 %v2649
  %2835 = vmatprep.subr.bf16.mxu0 %v2656
  %2836 = vmatpush1.bf16.msra.mxu0 %v2655
  %2837 = vmatprep.subr.bf16.mxu0 %v2662
  %2838 = vmatpush1.bf16.msra.mxu0 %v2661
  %2839 = vmatprep.subr.bf16.mxu0 %v2668
  %2840 = vmatpush1.bf16.msra.mxu0 %v2667
  %2841 = vmatprep.subr.bf16.mxu0 %v2674
  %2842 = vmatpush1.bf16.msra.mxu0 %v2673
  %2843 = vmatprep.mubr.bf16.mxu0 %v2140
  %2844 = vmatmul.mubr.bf16.gmra.mrb[0].mxu0 %v2139
  %v2845 = vpop.f32.mrb[0].mxu0
  %v2846 = vadd.f32 0.0, %v2845
  %v2847 = vpop.f32.mrb[0].mxu0
  %v2848 = vadd.f32 0.0, %v2847
  %v2849 = vpop.f32.mrb[0].mxu0
  %v2850 = vadd.f32 0.0, %v2849
  %v2851 = vpop.f32.mrb[0].mxu0
  %v2852 = vadd.f32 0.0, %v2851
  %2853 = vmatprep.mubr.bf16.mxu0 %v2143
  %2854 = vmatmul.mubr.bf16.gmra.mrb[0].mxu0 %v2142
  %v2855 = vpop.f32.mrb[0].mxu0
  %v2856 = vadd.f32 0.0, %v2855
  %v2857 = vpop.f32.mrb[0].mxu0
  %v2858 = vadd.f32 0.0, %v2857
  %v2859 = vpop.f32.mrb[0].mxu0
  %v2860 = vadd.f32 0.0, %v2859
  %v2861 = vpop.f32.mrb[0].mxu0
  %v2862 = vadd.f32 0.0, %v2861
  %2863 = vmatprep.mubr.bf16.mxu0 %v2146
  %2864 = vmatmul.mubr.bf16.gmra.mrb[0].mxu0 %v2145
  %v2865 = vpop.f32.mrb[0].mxu0
  %v2866 = vadd.f32 0.0, %v2865
  %v2867 = vpop.f32.mrb[0].mxu0
  %v2868 = vadd.f32 0.0, %v2867
  %v2869 = vpop.f32.mrb[0].mxu0
  %v2870 = vadd.f32 0.0, %v2869
  %v2871 = vpop.f32.mrb[0].mxu0
  %v2872 = vadd.f32 0.0, %v2871
  %2873 = vmatprep.mubr.bf16.mxu0 %v2149
  %2874 = vmatmul.mubr.bf16.gmra.mrb[0].mxu0 %v2148
  %v2875 = vpop.f32.mrb[0].mxu0
  %v2876 = vadd.f32 0.0, %v2875
  %v2877 = vpop.f32.mrb[0].mxu0
  %v2878 = vadd.f32 0.0, %v2877
  %v2879 = vpop.f32.mrb[0].mxu0
  %v2880 = vpop.f32.mrb[0].mxu0
  %2881 = vdwg.mxu0
  %2882 = vmatprep.subr.bf16.mxu0 %v2680
  %2883 = vmatpush1.bf16.msra.mxu0 %v2679
  %2884 = vmatprep.subr.bf16.mxu0 %v2686
  %2885 = vmatpush1.bf16.msra.mxu0 %v2685
  %2886 = vmatprep.subr.bf16.mxu0 0
  %2887 = vmatpush1.bf16.msra.mxu0 0
  %2888 = vmatprep.subr.bf16.mxu0 0
  %2889 = vmatpush1.bf16.msra.mxu0 0
  %2890 = vmatprep.subr.bf16.mxu0 0
  %2891 = vmatpush1.bf16.msra.mxu0 0
  %2892 = vmatprep.subr.bf16.mxu0 0
  %2893 = vmatpush1.bf16.msra.mxu0 0
  %2894 = vmatprep.subr.bf16.mxu0 0
  %2895 = vmatpush1.bf16.msra.mxu0 0
  %2896 = vmatprep.subr.bf16.mxu0 0
  %2897 = vmatpush1.bf16.msra.mxu0 0
  %2898 = vmatprep.subr.bf16.mxu0 0
  %2899 = vmatpush1.bf16.msra.mxu0 0
  %2900 = vmatprep.subr.bf16.mxu0 0
  %2901 = vmatpush1.bf16.msra.mxu0 0
  %2902 = vmatprep.subr.bf16.mxu0 0
  %2903 = vmatpush1.bf16.msra.mxu0 0
  %2904 = vmatprep.subr.bf16.mxu0 0
  %2905 = vmatpush1.bf16.msra.mxu0 0
  %2906 = vmatprep.subr.bf16.mxu0 0
  %2907 = vmatpush1.bf16.msra.mxu0 0
  %2908 = vmatprep.subr.bf16.mxu0 0
  %2909 = vmatpush1.bf16.msra.mxu0 0
  %2910 = vmatprep.subr.bf16.mxu0 0
  %2911 = vmatpush1.bf16.msra.mxu0 0
  %2912 = vmatprep.subr.bf16.mxu0 0
  %2913 = vmatpush1.bf16.msra.mxu0 0
  %2914 = vmatprep.mubr.bf16.mxu0 0
  %2915 = vmatmul.mubr.bf16.gmra.mrb[0].mxu0 %v2800
  %v2916 = vpop.f32.mrb[0].mxu0
  %v2917 = vadd.f32 %v2846, %v2916
  %v2918 = vpop.f32.mrb[0].mxu0
  %v2919 = vadd.f32 %v2848, %v2918
  %v2920 = vpop.f32.mrb[0].mxu0
  %v2921 = vadd.f32 %v2850, %v2920
  %v2922 = vpop.f32.mrb[0].mxu0
  %v2923 = vadd.f32 %v2852, %v2922
  %2924 = vmatprep.mubr.bf16.mxu0 0
  %2925 = vmatmul.mubr.bf16.gmra.mrb[0].mxu0 %v2803
  %v2926 = vpop.f32.mrb[0].mxu0
  %v2927 = vadd.f32 %v2856, %v2926
  %v2928 = vpop.f32.mrb[0].mxu0
  %v2929 = vadd.f32 %v2858, %v2928
  %v2930 = vpop.f32.mrb[0].mxu0
  %v2931 = vadd.f32 %v2860, %v2930
  %v2932 = vpop.f32.mrb[0].mxu0
  %v2933 = vadd.f32 %v2862, %v2932
  %2934 = vmatprep.mubr.bf16.mxu0 0
  %2935 = vmatmul.mubr.bf16.gmra.mrb[0].mxu0 %v2806
  %v2936 = vpop.f32.mrb[0].mxu0
  %v2937 = vadd.f32 %v2866, %v2936
  %v2938 = vpop.f32.mrb[0].mxu0
  %v2939 = vadd.f32 %v2868, %v2938
  %v2940 = vpop.f32.mrb[0].mxu0
  %v2941 = vadd.f32 %v2870, %v2940
  %v2942 = vpop.f32.mrb[0].mxu0
  %v2943 = vadd.f32 %v2872, %v2942
  %2944 = vmatprep.mubr.bf16.mxu0 0
  %2945 = vmatmul.mubr.bf16.gmra.mrb[0].mxu0 %v2809
  %v2946 = vpop.f32.mrb[0].mxu0
  %v2947 = vadd.f32 %v2876, %v2946
  %v2948 = vpop.f32.mrb[0].mxu0
  %v2949 = vadd.f32 %v2878, %v2948
  %v2950 = vpop.f32.mrb[0].mxu0
  %v2951 = vpop.f32.mrb[0].mxu0
  %2952 = vdwg.mxu0
  %2953 = vmatprep.subr.bf16.mxu0 %v2586
  %2954 = vmatpush1.bf16.msra.mxu0 %v2585
  %2955 = vmatprep.subr.bf16.mxu0 %v2592
  %2956 = vmatpush1.bf16.msra.mxu0 %v2591
  %2957 = vmatprep.subr.bf16.mxu0 %v2598
  %2958 = vmatpush1.bf16.msra.mxu0 %v2597
  %2959 = vmatprep.subr.bf16.mxu0 %v2604
  %2960 = vmatpush1.bf16.msra.mxu0 %v2603
  %2961 = vmatprep.subr.bf16.mxu0 %v2610
  %2962 = vmatpush1.bf16.msra.mxu0 %v2609
  %2963 = vmatprep.subr.bf16.mxu0 %v2616
  %2964 = vmatpush1.bf16.msra.mxu0 %v2615
  %2965 = vmatprep.subr.bf16.mxu0 %v2622
  %2966 = vmatpush1.bf16.msra.mxu0 %v2621
  %2967 = vmatprep.subr.bf16.mxu0 %v2628
  %2968 = vmatpush1.bf16.msra.mxu0 %v2627
  %2969 = vmatprep.subr.bf16.mxu0 %v2634
  %2970 = vmatpush1.bf16.msra.mxu0 %v2633
  %2971 = vmatprep.subr.bf16.mxu0 %v2640
  %2972 = vmatpush1.bf16.msra.mxu0 %v2639
  %2973 = vmatprep.subr.bf16.mxu0 %v2646
  %2974 = vmatpush1.bf16.msra.mxu0 %v2645
  %2975 = vmatprep.subr.bf16.mxu0 %v2652
  %2976 = vmatpush1.bf16.msra.mxu0 %v2651
  %2977 = vmatprep.subr.bf16.mxu0 %v2658
  %2978 = vmatpush1.bf16.msra.mxu0 %v2657
  %2979 = vmatprep.subr.bf16.mxu0 %v2664
  %2980 = vmatpush1.bf16.msra.mxu0 %v2663
  %2981 = vmatprep.subr.bf16.mxu0 %v2670
  %2982 = vmatpush1.bf16.msra.mxu0 %v2669
  %2983 = vmatprep.subr.bf16.mxu0 %v2676
  %2984 = vmatpush1.bf16.msra.mxu0 %v2675
  %2985 = vmatprep.mubr.bf16.mxu0 %v2140
  %2986 = vmatmul.mubr.bf16.gmra.mrb[0].mxu0 %v2139
  %v2987 = vpop.f32.mrb[0].mxu0
  %v2988 = vadd.f32 0.0, %v2987
  %v2989 = vpop.f32.mrb[0].mxu0
  %v2990 = vadd.f32 0.0, %v2989
  %v2991 = vpop.f32.mrb[0].mxu0
  %v2992 = vadd.f32 0.0, %v2991
  %v2993 = vpop.f32.mrb[0].mxu0
  %v2994 = vadd.f32 0.0, %v2993
  %2995 = vmatprep.mubr.bf16.mxu0 %v2143
  %2996 = vmatmul.mubr.bf16.gmra.mrb[0].mxu0 %v2142
  %v2997 = vpop.f32.mrb[0].mxu0
  %v2998 = vadd.f32 0.0, %v2997
  %v2999 = vpop.f32.mrb[0].mxu0
  %v3000 = vadd.f32 0.0, %v2999
  %v3001 = vpop.f32.mrb[0].mxu0
  %v3002 = vadd.f32 0.0, %v3001
  %v3003 = vpop.f32.mrb[0].mxu0
  %v3004 = vadd.f32 0.0, %v3003
  %3005 = vmatprep.mubr.bf16.mxu0 %v2146
  %3006 = vmatmul.mubr.bf16.gmra.mrb[0].mxu0 %v2145
  %v3007 = vpop.f32.mrb[0].mxu0
  %v3008 = vadd.f32 0.0, %v3007
  %v3009 = vpop.f32.mrb[0].mxu0
  %v3010 = vadd.f32 0.0, %v3009
  %v3011 = vpop.f32.mrb[0].mxu0
  %v3012 = vadd.f32 0.0, %v3011
  %v3013 = vpop.f32.mrb[0].mxu0
  %v3014 = vadd.f32 0.0, %v3013
  %3015 = vmatprep.mubr.bf16.mxu0 %v2149
  %3016 = vmatmul.mubr.bf16.gmra.mrb[0].mxu0 %v2148
  %v3017 = vpop.f32.mrb[0].mxu0
  %v3018 = vadd.f32 0.0, %v3017
  %v3019 = vpop.f32.mrb[0].mxu0
  %v3020 = vadd.f32 0.0, %v3019
  %v3021 = vpop.f32.mrb[0].mxu0
  %v3022 = vpop.f32.mrb[0].mxu0
  %3023 = vdwg.mxu0
  %3024 = vmatprep.subr.bf16.mxu0 %v2682
  %3025 = vmatpush1.bf16.msra.mxu0 %v2681
  %3026 = vmatprep.subr.bf16.mxu0 %v2688
  %3027 = vmatpush1.bf16.msra.mxu0 %v2687
  %3028 = vmatprep.subr.bf16.mxu0 0
  %3029 = vmatpush1.bf16.msra.mxu0 0
  %3030 = vmatprep.subr.bf16.mxu0 0
  %3031 = vmatpush1.bf16.msra.mxu0 0
  %3032 = vmatprep.subr.bf16.mxu0 0
  %3033 = vmatpush1.bf16.msra.mxu0 0
  %3034 = vmatprep.subr.bf16.mxu0 0
  %3035 = vmatpush1.bf16.msra.mxu0 0
  %3036 = vmatprep.subr.bf16.mxu0 0
  %3037 = vmatpush1.bf16.msra.mxu0 0
  %3038 = vmatprep.subr.bf16.mxu0 0
  %3039 = vmatpush1.bf16.msra.mxu0 0
  %3040 = vmatprep.subr.bf16.mxu0 0
  %3041 = vmatpush1.bf16.msra.mxu0 0
  %3042 = vmatprep.subr.bf16.mxu0 0
  %3043 = vmatpush1.bf16.msra.mxu0 0
  %3044 = vmatprep.subr.bf16.mxu0 0
  %3045 = vmatpush1.bf16.msra.mxu0 0
  %3046 = vmatprep.subr.bf16.mxu0 0
  %3047 = vmatpush1.bf16.msra.mxu0 0
  %3048 = vmatprep.subr.bf16.mxu0 0
  %3049 = vmatpush1.bf16.msra.mxu0 0
  %3050 = vmatprep.subr.bf16.mxu0 0
  %3051 = vmatpush1.bf16.msra.mxu0 0
  %3052 = vmatprep.subr.bf16.mxu0 0
  %3053 = vmatpush1.bf16.msra.mxu0 0
  %3054 = vmatprep.subr.bf16.mxu0 0
  %3055 = vmatpush1.bf16.msra.mxu0 0
  %3056 = vmatprep.mubr.bf16.mxu0 0
  %3057 = vmatmul.mubr.bf16.gmra.mrb[0].mxu0 %v2800
  %v3058 = vpop.f32.mrb[0].mxu0
  %v3059 = vadd.f32 %v2988, %v3058
  %v3060 = vpop.f32.mrb[0].mxu0
  %v3061 = vadd.f32 %v2990, %v3060
  %v3062 = vpop.f32.mrb[0].mxu0
  %v3063 = vadd.f32 %v2992, %v3062
  %v3064 = vpop.f32.mrb[0].mxu0
  %v3065 = vadd.f32 %v2994, %v3064
  %3066 = vmatprep.mubr.bf16.mxu0 0
  %3067 = vmatmul.mubr.bf16.gmra.mrb[0].mxu0 %v2803
  %v3068 = vpop.f32.mrb[0].mxu0
  %v3069 = vadd.f32 %v2998, %v3068
  %v3070 = vpop.f32.mrb[0].mxu0
  %v3071 = vadd.f32 %v3000, %v3070
  %v3072 = vpop.f32.mrb[0].mxu0
  %v3073 = vadd.f32 %v3002, %v3072
  %v3074 = vpop.f32.mrb[0].mxu0
  %v3075 = vadd.f32 %v3004, %v3074
  %3076 = vmatprep.mubr.bf16.mxu0 0
  %3077 = vmatmul.mubr.bf16.gmra.mrb[0].mxu0 %v2806
  %v3078 = vpop.f32.mrb[0].mxu0
  %v3079 = vadd.f32 %v3008, %v3078
  %v3080 = vpop.f32.mrb[0].mxu0
  %v3081 = vadd.f32 %v3010, %v3080
  %v3082 = vpop.f32.mrb[0].mxu0
  %v3083 = vadd.f32 %v3012, %v3082
  %v3084 = vpop.f32.mrb[0].mxu0
  %v3085 = vadd.f32 %v3014, %v3084
  %3086 = vmatprep.mubr.bf16.mxu0 0
  %3087 = vmatmul.mubr.bf16.gmra.mrb[0].mxu0 %v2809
  %v3088 = vpop.f32.mrb[0].mxu0
  %v3089 = vadd.f32 %v3018, %v3088
  %v3090 = vpop.f32.mrb[0].mxu0
  %v3091 = vadd.f32 %v3020, %v3090
  %v3092 = vpop.f32.mrb[0].mxu0
  %v3093 = vpop.f32.mrb[0].mxu0
  %3094 = vdwg.mxu0
  %3095 = vmatprep.subr.bf16.mxu0 %v2588
  %3096 = vmatpush1.bf16.msra.mxu0 %v2587
  %3097 = vmatprep.subr.bf16.mxu0 %v2594
  %3098 = vmatpush1.bf16.msra.mxu0 %v2593
  %3099 = vmatprep.subr.bf16.mxu0 %v2600
  %3100 = vmatpush1.bf16.msra.mxu0 %v2599
  %3101 = vmatprep.subr.bf16.mxu0 %v2606
  %3102 = vmatpush1.bf16.msra.mxu0 %v2605
  %3103 = vmatprep.subr.bf16.mxu0 %v2612
  %3104 = vmatpush1.bf16.msra.mxu0 %v2611
  %3105 = vmatprep.subr.bf16.mxu0 %v2618
  %3106 = vmatpush1.bf16.msra.mxu0 %v2617
  %3107 = vmatprep.subr.bf16.mxu0 %v2624
  %3108 = vmatpush1.bf16.msra.mxu0 %v2623
  %3109 = vmatprep.subr.bf16.mxu0 %v2630
  %3110 = vmatpush1.bf16.msra.mxu0 %v2629
  %3111 = vmatprep.subr.bf16.mxu0 %v2636
  %3112 = vmatpush1.bf16.msra.mxu0 %v2635
  %3113 = vmatprep.subr.bf16.mxu0 %v2642
  %3114 = vmatpush1.bf16.msra.mxu0 %v2641
  %3115 = vmatprep.subr.bf16.mxu0 %v2648
  %3116 = vmatpush1.bf16.msra.mxu0 %v2647
  %3117 = vmatprep.subr.bf16.mxu0 %v2654
  %3118 = vmatpush1.bf16.msra.mxu0 %v2653
  %3119 = vmatprep.subr.bf16.mxu0 %v2660
  %3120 = vmatpush1.bf16.msra.mxu0 %v2659
  %3121 = vmatprep.subr.bf16.mxu0 %v2666
  %3122 = vmatpush1.bf16.msra.mxu0 %v2665
  %3123 = vmatprep.subr.bf16.mxu0 %v2672
  %3124 = vmatpush1.bf16.msra.mxu0 %v2671
  %3125 = vmatprep.subr.bf16.mxu0 %v2678
  %3126 = vmatpush1.bf16.msra.mxu0 %v2677
  %3127 = vmatprep.mubr.bf16.mxu0 %v2140
  %3128 = vmatmul.mubr.bf16.gmra.mrb[0].mxu0 %v2139
  %v3129 = vpop.f32.mrb[0].mxu0
  %v3130 = vadd.f32 0.0, %v3129
  %v3131 = vpop.f32.mrb[0].mxu0
  %v3132 = vadd.f32 0.0, %v3131
  %v3133 = vpop.f32.mrb[0].mxu0
  %v3134 = vadd.f32 0.0, %v3133
  %v3135 = vpop.f32.mrb[0].mxu0
  %v3136 = vadd.f32 0.0, %v3135
  %3137 = vmatprep.mubr.bf16.mxu0 %v2143
  %3138 = vmatmul.mubr.bf16.gmra.mrb[0].mxu0 %v2142
  %v3139 = vpop.f32.mrb[0].mxu0
  %v3140 = vadd.f32 0.0, %v3139
  %v3141 = vpop.f32.mrb[0].mxu0
  %v3142 = vadd.f32 0.0, %v3141
  %v3143 = vpop.f32.mrb[0].mxu0
  %v3144 = vadd.f32 0.0, %v3143
  %v3145 = vpop.f32.mrb[0].mxu0
  %v3146 = vadd.f32 0.0, %v3145
  %3147 = vmatprep.mubr.bf16.mxu0 %v2146
  %3148 = vmatmul.mubr.bf16.gmra.mrb[0].mxu0 %v2145
  %v3149 = vpop.f32.mrb[0].mxu0
  %v3150 = vadd.f32 0.0, %v3149
  %v3151 = vpop.f32.mrb[0].mxu0
  %v3152 = vadd.f32 0.0, %v3151
  %v3153 = vpop.f32.mrb[0].mxu0
  %v3154 = vadd.f32 0.0, %v3153
  %v3155 = vpop.f32.mrb[0].mxu0
  %v3156 = vadd.f32 0.0, %v3155
  %3157 = vmatprep.mubr.bf16.mxu0 %v2149
  %3158 = vmatmul.mubr.bf16.gmra.mrb[0].mxu0 %v2148
  %v3159 = vpop.f32.mrb[0].mxu0
  %v3160 = vadd.f32 0.0, %v3159
  %v3161 = vpop.f32.mrb[0].mxu0
  %v3162 = vadd.f32 0.0, %v3161
  %v3163 = vpop.f32.mrb[0].mxu0
  %v3164 = vpop.f32.mrb[0].mxu0
  %3165 = vdwg.mxu0
  %3166 = vmatprep.subr.bf16.mxu0 %v2684
  %3167 = vmatpush1.bf16.msra.mxu0 %v2683
  %3168 = vmatprep.subr.bf16.mxu0 %v2690
  %3169 = vmatpush1.bf16.msra.mxu0 %v2689
  %3170 = vmatprep.subr.bf16.mxu0 0
  %3171 = vmatpush1.bf16.msra.mxu0 0
  %3172 = vmatprep.subr.bf16.mxu0 0
  %3173 = vmatpush1.bf16.msra.mxu0 0
  %3174 = vmatprep.subr.bf16.mxu0 0
  %3175 = vmatpush1.bf16.msra.mxu0 0
  %3176 = vmatprep.subr.bf16.mxu0 0
  %3177 = vmatpush1.bf16.msra.mxu0 0
  %3178 = vmatprep.subr.bf16.mxu0 0
  %3179 = vmatpush1.bf16.msra.mxu0 0
  %3180 = vmatprep.subr.bf16.mxu0 0
  %3181 = vmatpush1.bf16.msra.mxu0 0
  %3182 = vmatprep.subr.bf16.mxu0 0
  %3183 = vmatpush1.bf16.msra.mxu0 0
  %3184 = vmatprep.subr.bf16.mxu0 0
  %3185 = vmatpush1.bf16.msra.mxu0 0
  %3186 = vmatprep.subr.bf16.mxu0 0
  %3187 = vmatpush1.bf16.msra.mxu0 0
  %3188 = vmatprep.subr.bf16.mxu0 0
  %3189 = vmatpush1.bf16.msra.mxu0 0
  %3190 = vmatprep.subr.bf16.mxu0 0
  %3191 = vmatpush1.bf16.msra.mxu0 0
  %3192 = vmatprep.subr.bf16.mxu0 0
  %3193 = vmatpush1.bf16.msra.mxu0 0
  %3194 = vmatprep.subr.bf16.mxu0 0
  %3195 = vmatpush1.bf16.msra.mxu0 0
  %3196 = vmatprep.subr.bf16.mxu0 0
  %3197 = vmatpush1.bf16.msra.mxu0 0
  %3198 = vmatprep.mubr.bf16.mxu0 0
  %3199 = vmatmul.mubr.bf16.gmra.mrb[0].mxu0 %v2800
  %v3200 = vpop.f32.mrb[0].mxu0
  %v3201 = vadd.f32 %v3130, %v3200
  %v3202 = vpop.f32.mrb[0].mxu0
  %v3203 = vadd.f32 %v3132, %v3202
  %v3204 = vpop.f32.mrb[0].mxu0
  %v3205 = vadd.f32 %v3134, %v3204
  %v3206 = vpop.f32.mrb[0].mxu0
  %v3207 = vadd.f32 %v3136, %v3206
  %3208 = vmatprep.mubr.bf16.mxu0 0
  %3209 = vmatmul.mubr.bf16.gmra.mrb[0].mxu0 %v2803
  %v3210 = vpop.f32.mrb[0].mxu0
  %v3211 = vadd.f32 %v3140, %v3210
  %v3212 = vpop.f32.mrb[0].mxu0
  %v3213 = vadd.f32 %v3142, %v3212
  %v3214 = vpop.f32.mrb[0].mxu0
  %v3215 = vadd.f32 %v3144, %v3214
  %v3216 = vpop.f32.mrb[0].mxu0
  %v3217 = vadd.f32 %v3146, %v3216
  %3218 = vmatprep.mubr.bf16.mxu0 0
  %3219 = vmatmul.mubr.bf16.gmra.mrb[0].mxu0 %v2806
  %v3220 = vpop.f32.mrb[0].mxu0
  %v3221 = vadd.f32 %v3150, %v3220
  %v3222 = vpop.f32.mrb[0].mxu0
  %v3223 = vadd.f32 %v3152, %v3222
  %v3224 = vpop.f32.mrb[0].mxu0
  %v3225 = vadd.f32 %v3154, %v3224
  %v3226 = vpop.f32.mrb[0].mxu0
  %v3227 = vadd.f32 %v3156, %v3226
  %3228 = vmatprep.mubr.bf16.mxu0 0
  %3229 = vmatmul.mubr.bf16.gmra.mrb[0].mxu0 %v2809
  %v3230 = vpop.f32.mrb[0].mxu0
  %v3231 = vadd.f32 %v3160, %v3230
  %v3232 = vpop.f32.mrb[0].mxu0
  %v3233 = vadd.f32 %v3162, %v3232
  %v3234 = vpop.f32.mrb[0].mxu0
  %v3235 = vpop.f32.mrb[0].mxu0
  %3236 = vdwg.mxu0
  %3237 = vst [vmem:[%s7] sm:$0xff] %v2917
  %3238 = vst [vmem:[%s7 + $0x8] sm:$0xff] %v2919
  %3239 = vst [vmem:[%s7 + $0x10] sm:$0xff] %v3059
  %3240 = vst [vmem:[%s7 + $0x18] sm:$0xff] %v3061
  %3241 = vst [vmem:[%s7 + $0x20] sm:$0xff] %v3201
  %3242 = vst.msk [vmem:[%s7 + $0x28] sm:$0xff] %vm627, %v3203
  %3243 = vst [vmem:[%s7 + $0x30] sm:$0xff] %v2921
  %3244 = vst [vmem:[%s7 + $0x38] sm:$0xff] %v2923
  %3245 = vst [vmem:[%s7 + $0x40] sm:$0xff] %v3063
  %3246 = vst [vmem:[%s7 + $0x48] sm:$0xff] %v3065
  %3247 = vst [vmem:[%s7 + $0x50] sm:$0xff] %v3205
  %3248 = vst.msk [vmem:[%s7 + $0x58] sm:$0xff] %vm627, %v3207
  %3249 = vst [vmem:[%s7 + $0x60] sm:$0xff] %v2927
  %3250 = vst [vmem:[%s7 + $0x68] sm:$0xff] %v2929
  %3251 = vst [vmem:[%s7 + $0x70] sm:$0xff] %v3069
  %3252 = vst [vmem:[%s7 + $0x78] sm:$0xff] %v3071
  %3253 = vst [vmem:[%s7 + $0x80] sm:$0xff] %v3211
  %3254 = vst.msk [vmem:[%s7 + $0x88] sm:$0xff] %vm627, %v3213
  %3255 = vst [vmem:[%s7 + $0x90] sm:$0xff] %v2931
  %3256 = vst [vmem:[%s7 + $0x98] sm:$0xff] %v2933
  %3257 = vst [vmem:[%s7 + $0xa0] sm:$0xff] %v3073
  %3258 = vst [vmem:[%s7 + $0xa8] sm:$0xff] %v3075
  %3259 = vst [vmem:[%s7 + $0xb0] sm:$0xff] %v3215
  %3260 = vst.msk [vmem:[%s7 + $0xb8] sm:$0xff] %vm627, %v3217
  %3261 = vst [vmem:[%s7 + $0xc0] sm:$0xff] %v2937
  %3262 = vst [vmem:[%s7 + $0xc8] sm:$0xff] %v2939
  %3263 = vst [vmem:[%s7 + $0xd0] sm:$0xff] %v3079
  %3264 = vst [vmem:[%s7 + $0xd8] sm:$0xff] %v3081
  %3265 = vst [vmem:[%s7 + $0xe0] sm:$0xff] %v3221
  %3266 = vst.msk [vmem:[%s7 + $0xe8] sm:$0xff] %vm627, %v3223
  %3267 = vst [vmem:[%s7 + $0xf0] sm:$0xff] %v2941
  %3268 = vst [vmem:[%s7 + $0xf8] sm:$0xff] %v2943
  %3269 = vst [vmem:[%s7 + $0x100] sm:$0xff] %v3083
  %3270 = vst [vmem:[%s7 + $0x108] sm:$0xff] %v3085
  %3271 = vst [vmem:[%s7 + $0x110] sm:$0xff] %v3225
  %3272 = vst.msk [vmem:[%s7 + $0x118] sm:$0xff] %vm627, %v3227
  %3273 = vst [vmem:[%s7 + $0x120] sm:$0x1] %v2947
  %3274 = vst [vmem:[%s7 + $0x128] sm:$0x1] %v2949
  %3275 = vst [vmem:[%s7 + $0x130] sm:$0x1] %v3089
  %3276 = vst [vmem:[%s7 + $0x138] sm:$0x1] %v3091
  %3277 = vst [vmem:[%s7 + $0x140] sm:$0x1] %v3231
  %vm3278 = vcmask 253952
  %3279 = vst.msk [vmem:[%s7 + $0x148] sm:$0x1] %vm3278, %v3233
  // Predicated region
  $region30: #{model_forward.1} parent=0 // pred_check
    _
  $region31: #{model_forward.1} parent=0 // pred_check_branch
    %3281 = sbr.rel (0) target = $region33
  $region32: #{model_forward.1} parent=0 // pred_region
    _
  $region33: #{model_forward.1} parent=0 // pred_fallthru
    _
  // Predicated region
  $region34: #{model_forward.1} parent=0 // pred_check
    _
  $region35: #{model_forward.1} parent=0 // pred_check_branch
    %3283 = sbr.rel (0) target = $region37
  $region36: #{model_forward.1} parent=0 // pred_region
    _
  $region37: #{model_forward.1} parent=0 // pred_fallthru
    _

</llo_original>
